<compile_context>
chip_gen: v6e
topology: v6e:2x2x1
jax: 0.10.0
libtpu: 0.0.40
codegen_flags: <defaults>
</compile_context>

<pallas_src>
import math

import jax
import jax.numpy as jnp
import numpy as np
from jax.experimental import pallas as pl
from jax.experimental.pallas import tpu as pltpu

H = 4            # attention heads
EPS = 1e-6
NEG_INF = -1e9


# ------------------------------ kernel helpers ------------------------------
def _layer_norm(x, gamma, beta):
    # a_2*(x-mean)/(std+eps)+b_2 with unbiased std (ddof=1), stats in f32.
    d = x.shape[-1]
    mean = jnp.mean(x, axis=-1, keepdims=True)
    diff = x - mean
    var = jnp.sum(diff * diff, axis=-1, keepdims=True) * (1.0 / (d - 1))
    inv = 1.0 / (jnp.sqrt(var) + EPS)        # exact: feeds the residual stream
    return gamma * (diff * inv) + beta


def _split_heads(x2d, dh):
    # (n, H*dh) f32 -> (H, n, dh) bf16 ; head-major view via static lane slices
    return jnp.stack([x2d[:, h * dh:(h + 1) * dh] for h in range(H)],
                     axis=0).astype(jnp.bfloat16)


def _mha(q2d, k2d, v2d, wo, bo, mask_add):
    # q2d: (T, D), k2d/v2d: (S, D) f32.  Q already carries the 1/sqrt(dh) scale.
    dh = q2d.shape[-1] // H
    q = _split_heads(q2d, dh)                               # (H, T, dh) bf16
    k = _split_heads(k2d, dh)                               # (H, S, dh) bf16
    v = _split_heads(v2d, dh)                               # (H, S, dh) bf16
    s = jnp.einsum("htk,hsk->hts", q, k,
                   preferred_element_type=jnp.float32)      # (H, T, S) f32
    s = s + mask_add[None]
    s = s - jnp.max(s, axis=-1, keepdims=True)
    p = jnp.exp(s)
    p = p * pl.reciprocal(jnp.sum(p, axis=-1, keepdims=True), approx=True)
    ctx = jnp.einsum("hts,hsk->htk", p.astype(jnp.bfloat16), v,
                     preferred_element_type=jnp.float32)    # (H, T, dh) f32
    ctx2d = jnp.concatenate([ctx[h] for h in range(H)], axis=-1)   # (T, D)
    # single lane-dense out-projection; head reduction inside the MXU acc.
    return jnp.dot(ctx2d.astype(jnp.bfloat16), wo,
                   preferred_element_type=jnp.float32) + bo


# --------------------------------- kernel -----------------------------------
def _decoder_layer_kernel(src_lens_ref,                      # SMEM (B,) int32
                          x_ref, m_ref,
                          s_wqkv_ref, s_bqkv_ref, s_wo_ref, s_bo_ref,
                          c_wq_ref, c_bq_ref, c_wkv_ref, c_bkv_ref,
                          c_wo_ref, c_bo_ref,
                          w1_ref, b1_ref, w2_ref, b2_ref,
                          lng_ref, lnb_ref,
                          o_ref):
    b = pl.program_id(0)
    x = x_ref[0]                  # (T, D) residual stream for this batch row
    mem = m_ref[0]                # (S, D) encoder memory for this batch row
    t, d = x.shape
    s_len = mem.shape[0]

    # additive masks, built once in-kernel (no HBM mask traffic)
    rows = jax.lax.broadcasted_iota(jnp.int32, (t, t), 0)
    cols = jax.lax.broadcasted_iota(jnp.int32, (t, t), 1)
    causal_add = jnp.where(rows >= cols, 0.0, NEG_INF).astype(jnp.float32)
    src_cols = jax.lax.broadcasted_iota(jnp.int32, (1, s_len), 1)
    src_add = jnp.where(src_cols < src_lens_ref[b], 0.0,
                        NEG_INF).astype(jnp.float32)          # (1, S)

    # ---- sublayer 0: x + self_attn(norm(x)) with causal mask ----
    h = _layer_norm(x, lng_ref[0], lnb_ref[0])
    qkv = jnp.dot(h.astype(jnp.bfloat16), s_wqkv_ref[...],
                  preferred_element_type=jnp.float32) + s_bqkv_ref[...]
    x = x + _mha(qkv[:, :d], qkv[:, d:2 * d], qkv[:, 2 * d:],
                 s_wo_ref[...], s_bo_ref[...], causal_add)

    # ---- sublayer 1: x + src_attn(norm(x), memory) with length mask ----
    h = _layer_norm(x, lng_ref[1], lnb_ref[1])
    q = jnp.dot(h.astype(jnp.bfloat16), c_wq_ref[...],
                preferred_element_type=jnp.float32) + c_bq_ref[...]
    kv = jnp.dot(mem.astype(jnp.bfloat16), c_wkv_ref[...],
                 preferred_element_type=jnp.float32) + c_bkv_ref[...]
    x = x + _mha(q, kv[:, :d], kv[:, d:], c_wo_ref[...], c_bo_ref[...], src_add)

    # ---- sublayer 2: x + FFN(norm(x))  (Linear -> ReLU -> Linear) ----
    h = _layer_norm(x, lng_ref[2], lnb_ref[2])
    ff = jnp.dot(h.astype(jnp.bfloat16), w1_ref[...],
                 preferred_element_type=jnp.float32) + b1_ref[...]
    ff = jnp.maximum(ff, 0.0)
    ff = jnp.dot(ff.astype(jnp.bfloat16), w2_ref[...],
                 preferred_element_type=jnp.float32) + b2_ref[...]
    o_ref[0] = x + ff


# -------------------------------- wrapper ------------------------------------
def decoder_layer(x, memory, src_lens, params):
    B, T, D = x.shape
    S = memory.shape[1]
    DFF = params["w1"].shape[1]
    dh = D // H
    scale = 1.0 / math.sqrt(dh)
    f32, bf16 = jnp.float32, jnp.bfloat16

    sw, sb = params["self_w"], params["self_b"]            # (4, D, D), (4, D)
    cw, cb = params["src_w"], params["src_b"]

    # fused, lane-dense weights; 1/sqrt(dh) folded into Wq / bq (exact fold)
    s_wqkv = jnp.concatenate([sw[0] * scale, sw[1], sw[2]], axis=1).astype(bf16)
    s_bqkv = jnp.concatenate([sb[0] * scale, sb[1], sb[2]])[None].astype(f32)
    s_wo = sw[3].astype(bf16)
    s_bo = sb[3][None].astype(f32)
    c_wq = (cw[0] * scale).astype(bf16)
    c_bq = (cb[0] * scale)[None].astype(f32)
    c_wkv = jnp.concatenate([cw[1], cw[2]], axis=1).astype(bf16)
    c_bkv = jnp.concatenate([cb[1], cb[2]])[None].astype(f32)
    c_wo = cw[3].astype(bf16)
    c_bo = cb[3][None].astype(f32)
    w1 = params["w1"].astype(bf16)
    b1 = params["b1"].astype(f32)
    w2 = params["w2"].astype(bf16)
    b2 = params["b2"].astype(f32)
    ln_g = params["ln_g"].astype(f32)
    ln_b = params["ln_b"].astype(f32)

    # VMEM budget: double-buffered activations/weights + f32 intermediates,
    # clamped to fit v7x (64 MiB) as well as v5e/v6e (128 MiB).
    weight_bytes = 2 * (3 * D * D + D * D + D * D + 2 * D * D + D * D
                        + D * DFF + DFF * D)                 # bf16 weights
    act_bytes = 4 * (T * D + S * D + T * D)                  # x, memory, out
    interm_bytes = 4 * (3 * T * D + 3 * H * T * max(T, S) + T * DFF
                        + 2 * S * D + 6 * T * D)
    vmem_limit = int(min(max(2 * (weight_bytes + act_bytes) + interm_bytes,
                             32 * 1024 * 1024), 48 * 1024 * 1024))

    flops = 2 * B * (3 * T * D * D + T * D * D               # self qkv + out
                     + 2 * T * T * D                         # self scores + pv
                     + T * D * D + 2 * S * D * D + T * D * D  # cross q/kv/out
                     + 2 * T * S * D                         # cross scores + pv
                     + 2 * T * D * DFF)                      # ffn
    transcendentals = B * H * T * (T + S)
    operands = (x, memory, s_wqkv, s_bqkv, s_wo, s_bo, c_wq, c_bq, c_wkv,
                c_bkv, c_wo, c_bo, w1, b1, w2, b2, ln_g, ln_b)
    bytes_accessed = sum(int(np.prod(a.shape)) * a.dtype.itemsize
                         for a in operands) + B * T * D * 4

    def const(shape):
        return pl.BlockSpec(shape, lambda b, lens: (0,) * len(shape))

    grid_spec = pltpu.PrefetchScalarGridSpec(
        num_scalar_prefetch=1,
        grid=(B,),
        in_specs=[
            pl.BlockSpec((1, T, D), lambda b, lens: (b, 0, 0)),   # x
            pl.BlockSpec((1, S, D), lambda b, lens: (b, 0, 0)),   # memory
            const((D, 3 * D)), const((1, 3 * D)), const((D, D)), const((1, D)),
            const((D, D)), const((1, D)), const((D, 2 * D)), const((1, 2 * D)),
            const((D, D)), const((1, D)),
            const((D, DFF)), const((1, DFF)), const((DFF, D)), const((1, D)),
            const((3, D)), const((3, D)),
        ],
        out_specs=pl.BlockSpec((1, T, D), lambda b, lens: (b, 0, 0)),
    )

    out = pl.pallas_call(
        _decoder_layer_kernel,
        out_shape=jax.ShapeDtypeStruct((B, T, D), jnp.float32),
        grid_spec=grid_spec,
        compiler_params=pltpu.CompilerParams(
            dimension_semantics=("parallel",),     # batch across TCs on v7x
            vmem_limit_bytes=vmem_limit),
        cost_estimate=pl.CostEstimate(flops=int(flops),
                                      transcendentals=int(transcendentals),
                                      bytes_accessed=int(bytes_accessed)),
    )(src_lens.astype(jnp.int32), x, memory,
      s_wqkv, s_bqkv, s_wo, s_bo, c_wq, c_bq, c_wkv, c_bkv, c_wo, c_bo,
      w1, b1, w2, b2, ln_g, ln_b)
    return out


# ------------------ pure-JAX reference (for sanity check) -------------------
def _layer_norm_ref(x, gamma, beta):
    d = x.shape[-1]
    mean = jnp.mean(x, axis=-1, keepdims=True)
    var = jnp.sum((x - mean) ** 2, axis=-1, keepdims=True) / (d - 1)
    return gamma * (x - mean) / (jnp.sqrt(var) + EPS) + beta


def _mha_ref(q_in, kv_in, w, b, mask):
    d = q_in.shape[-1]
    dh = d // H
    scale = 1.0 / math.sqrt(dh)
    q = q_in @ w[0] + b[0]
    k = kv_in @ w[1] + b[1]
    v = kv_in @ w[2] + b[2]
    outs = []
    for h in range(H):
        qh, kh, vh = (t[:, h * dh:(h + 1) * dh] for t in (q, k, v))
        sc = qh @ kh.T * scale
        sc = jnp.where(mask == 0, NEG_INF, sc)
        sc = sc - jnp.max(sc, axis=-1, keepdims=True)
        p = jnp.exp(sc)
        p = p / jnp.sum(p, axis=-1, keepdims=True)
        outs.append(p @ vh)
    return jnp.concatenate(outs, axis=-1) @ w[3] + b[3]


def decoder_layer_ref(x, memory, tgt_mask, src_mask, params):
    def one(xb, mb, tm, sm):
        h = _layer_norm_ref(xb, params["ln_g"][0], params["ln_b"][0])
        xb = xb + _mha_ref(h, h, params["self_w"], params["self_b"], tm)
        h = _layer_norm_ref(xb, params["ln_g"][1], params["ln_b"][1])
        xb = xb + _mha_ref(h, mb, params["src_w"], params["src_b"], sm)
        h = _layer_norm_ref(xb, params["ln_g"][2], params["ln_b"][2])
        ff = jnp.maximum(h @ params["w1"] + params["b1"][0], 0.0)
        ff = ff @ params["w2"] + params["b2"][0]
        return xb + ff
    return jax.vmap(one)(x, memory, tgt_mask, src_mask)


if __name__ == "__main__":
    B, T, S, D, DFF = 2, 8, 10, 32, 64
    key = jax.random.PRNGKey(0)
    keys = jax.random.split(key, 10)
    scale = 0.05

    x = jax.random.normal(keys[0], (B, T, D), jnp.float32)
    memory = jax.random.normal(keys[1], (B, S, D), jnp.float32)

    # causal target mask is generated in-kernel; source mask comes from lengths
    src_lens = jnp.array([S, S - 2], dtype=jnp.int32)

    params = {
        "self_w": jax.random.normal(keys[2], (4, D, D), jnp.float32) * scale,
        "self_b": jax.random.normal(keys[3], (4, D), jnp.float32) * scale,
        "src_w":  jax.random.normal(keys[4], (4, D, D), jnp.float32) * scale,
        "src_b":  jax.random.normal(keys[5], (4, D), jnp.float32) * scale,
        "w1":     jax.random.normal(keys[6], (D, DFF), jnp.float32) * scale,
        "b1":     jax.random.normal(keys[7], (1, DFF), jnp.float32) * scale,
        "w2":     jax.random.normal(keys[8], (DFF, D), jnp.float32) * scale,
        "b2":     jax.random.normal(keys[9], (1, D), jnp.float32) * scale,
        "ln_g":   jnp.ones((3, D), jnp.float32),
        "ln_b":   jnp.zeros((3, D), jnp.float32),
    }

    out = decoder_layer(x, memory, src_lens, params)
    jax.block_until_ready(out)

    # reference with explicit masks (same semantics as the in-kernel masks)
    tgt_mask = jnp.broadcast_to(jnp.tril(jnp.ones((T, T), jnp.float32)), (B, T, T))
    src_mask = (jnp.arange(S)[None, :] < src_lens[:, None]
                ).astype(jnp.float32)[:, None, :]
    ref = decoder_layer_ref(x, memory, tgt_mask, src_mask, params)

    assert out.shape == (B, T, D)
    assert bool(jnp.all(jnp.isfinite(out)))
    np.testing.assert_allclose(np.asarray(out), np.asarray(ref),
                               rtol=2e-2, atol=2e-2)
    print("KERNEL_OK")
</pallas_src>

<mosaic_0001>
module attributes {stable_mosaic.version = 11 : i64} {
  func.func @_decoder_layer_kernel(%arg0: i32, %arg1: memref<2xi32, #tpu.memory_space<smem>>, %arg2: memref<1x8x32xf32, #tpu.memory_space<vmem>>, %arg3: memref<1x10x32xf32, #tpu.memory_space<vmem>>, %arg4: memref<32x96xbf16, #tpu.memory_space<vmem>>, %arg5: memref<1x96xf32, #tpu.memory_space<vmem>>, %arg6: memref<32x32xbf16, #tpu.memory_space<vmem>>, %arg7: memref<1x32xf32, #tpu.memory_space<vmem>>, %arg8: memref<32x32xbf16, #tpu.memory_space<vmem>>, %arg9: memref<1x32xf32, #tpu.memory_space<vmem>>, %arg10: memref<32x64xbf16, #tpu.memory_space<vmem>>, %arg11: memref<1x64xf32, #tpu.memory_space<vmem>>, %arg12: memref<32x32xbf16, #tpu.memory_space<vmem>>, %arg13: memref<1x32xf32, #tpu.memory_space<vmem>>, %arg14: memref<32x64xbf16, #tpu.memory_space<vmem>>, %arg15: memref<1x64xf32, #tpu.memory_space<vmem>>, %arg16: memref<64x32xbf16, #tpu.memory_space<vmem>>, %arg17: memref<1x32xf32, #tpu.memory_space<vmem>>, %arg18: memref<3x32xf32, #tpu.memory_space<vmem>>, %arg19: memref<3x32xf32, #tpu.memory_space<vmem>>, %arg20: memref<1x8x32xf32, #tpu.memory_space<vmem>>) attributes {dimension_semantics = [#tpu.dimension_semantics<parallel>], iteration_bounds = array<i64: 2>, scalar_prefetch = 1 : i64, scratch_operands = 0 : i64, tpu.core_type = #tpu.core_type<tc>, window_params = [{transform_indices = @transform_0, window_bounds = array<i64: 1, 8, 32>}, {transform_indices = @transform_1, window_bounds = array<i64: 1, 10, 32>}, {pipeline_mode = #tpu.pipeline_mode<synchronous>, transform_indices = @transform_2, window_bounds = array<i64: 32, 96>}, {pipeline_mode = #tpu.pipeline_mode<synchronous>, transform_indices = @transform_3, window_bounds = array<i64: 1, 96>}, {pipeline_mode = #tpu.pipeline_mode<synchronous>, transform_indices = @transform_4, window_bounds = array<i64: 32, 32>}, {pipeline_mode = #tpu.pipeline_mode<synchronous>, transform_indices = @transform_5, window_bounds = array<i64: 1, 32>}, {pipeline_mode = #tpu.pipeline_mode<synchronous>, transform_indices = @transform_6, window_bounds = array<i64: 32, 32>}, {pipeline_mode = #tpu.pipeline_mode<synchronous>, transform_indices = @transform_7, window_bounds = array<i64: 1, 32>}, {pipeline_mode = #tpu.pipeline_mode<synchronous>, transform_indices = @transform_8, window_bounds = array<i64: 32, 64>}, {pipeline_mode = #tpu.pipeline_mode<synchronous>, transform_indices = @transform_9, window_bounds = array<i64: 1, 64>}, {pipeline_mode = #tpu.pipeline_mode<synchronous>, transform_indices = @transform_10, window_bounds = array<i64: 32, 32>}, {pipeline_mode = #tpu.pipeline_mode<synchronous>, transform_indices = @transform_11, window_bounds = array<i64: 1, 32>}, {pipeline_mode = #tpu.pipeline_mode<synchronous>, transform_indices = @transform_12, window_bounds = array<i64: 32, 64>}, {pipeline_mode = #tpu.pipeline_mode<synchronous>, transform_indices = @transform_13, window_bounds = array<i64: 1, 64>}, {pipeline_mode = #tpu.pipeline_mode<synchronous>, transform_indices = @transform_14, window_bounds = array<i64: 64, 32>}, {pipeline_mode = #tpu.pipeline_mode<synchronous>, transform_indices = @transform_15, window_bounds = array<i64: 1, 32>}, {pipeline_mode = #tpu.pipeline_mode<synchronous>, transform_indices = @transform_16, window_bounds = array<i64: 3, 32>}, {pipeline_mode = #tpu.pipeline_mode<synchronous>, transform_indices = @transform_17, window_bounds = array<i64: 3, 32>}, {transform_indices = @transform_18, window_bounds = array<i64: 1, 8, 32>}]} {
    %c0 = arith.constant 0 : index
    %c0_0 = arith.constant 0 : index
    %c0_1 = arith.constant 0 : index
    %0 = vector.load %arg2[%c0, %c0_0, %c0_1] : memref<1x8x32xf32, #tpu.memory_space<vmem>>, vector<1x8x32xf32>
    %1 = vector.shape_cast %0 : vector<1x8x32xf32> to vector<8x32xf32>
    %c0_2 = arith.constant 0 : index
    %c0_3 = arith.constant 0 : index
    %c0_4 = arith.constant 0 : index
    %2 = vector.load %arg3[%c0_2, %c0_3, %c0_4] : memref<1x10x32xf32, #tpu.memory_space<vmem>>, vector<1x10x32xf32>
    %3 = vector.shape_cast %2 : vector<1x10x32xf32> to vector<10x32xf32>
    %4 = tpu.iota {dimensions = array<i32: 0>} : vector<8x8xi32>
    %5 = tpu.iota {dimensions = array<i32: 1>} : vector<8x8xi32>
    %6 = arith.cmpi sge, %4, %5 : vector<8x8xi32>
    %cst = arith.constant 0.000000e+00 : f32
    %cst_5 = arith.constant -1.000000e+09 : f32
    %7 = vector.broadcast %cst : f32 to vector<8x8xf32>
    %8 = vector.broadcast %cst_5 : f32 to vector<8x8xf32>
    %9 = arith.select %6, %7, %8 : vector<8x8xi1>, vector<8x8xf32>
    %10 = tpu.iota {dimensions = array<i32: 1>} : vector<1x10xi32>
    %11 = arith.index_cast %arg0 : i32 to index
    %12 = memref.load %arg1[%11] : memref<2xi32, #tpu.memory_space<smem>>
    %13 = vector.broadcast %12 : i32 to vector<1x10xi32>
    %14 = arith.cmpi slt, %10, %13 : vector<1x10xi32>
    %cst_6 = arith.constant 0.000000e+00 : f32
    %cst_7 = arith.constant -1.000000e+09 : f32
    %15 = vector.broadcast %cst_6 : f32 to vector<1x10xf32>
    %16 = vector.broadcast %cst_7 : f32 to vector<1x10xf32>
    %17 = arith.select %14, %15, %16 : vector<1x10xi1>, vector<1x10xf32>
    %c0_8 = arith.constant 0 : index
    %c0_9 = arith.constant 0 : index
    %18 = vector.load %arg18[%c0_8, %c0_9] : memref<3x32xf32, #tpu.memory_space<vmem>>, vector<1x32xf32>
    %19 = vector.shape_cast %18 : vector<1x32xf32> to vector<32xf32>
    %c0_10 = arith.constant 0 : index
    %c0_11 = arith.constant 0 : index
    %20 = vector.load %arg19[%c0_10, %c0_11] : memref<3x32xf32, #tpu.memory_space<vmem>>, vector<1x32xf32>
    %21 = vector.shape_cast %20 : vector<1x32xf32> to vector<32xf32>
    %cst_12 = arith.constant dense<0.000000e+00> : vector<8xf32>
    %22 = vector.multi_reduction <add>, %1, %cst_12 [1] : vector<8x32xf32> to vector<8xf32>
    %23 = vector.shape_cast %22 : vector<8xf32> to vector<8x1xf32>
    %cst_13 = arith.constant 3.200000e+01 : f32
    %24 = vector.broadcast %cst_13 : f32 to vector<8x1xf32>
    %25 = arith.divf %23, %24 : vector<8x1xf32>
    %26 = vector.broadcast %25 : vector<8x1xf32> to vector<8x32xf32>
    %27 = arith.subf %1, %26 : vector<8x32xf32>
    %28 = arith.mulf %27, %27 : vector<8x32xf32>
    %cst_14 = arith.constant dense<0.000000e+00> : vector<8xf32>
    %29 = vector.multi_reduction <add>, %28, %cst_14 [1] : vector<8x32xf32> to vector<8xf32>
    %30 = vector.shape_cast %29 : vector<8xf32> to vector<8x1xf32>
    %cst_15 = arith.constant 0.0322580636 : f32
    %31 = vector.broadcast %cst_15 : f32 to vector<8x1xf32>
    %32 = arith.mulf %30, %31 : vector<8x1xf32>
    %33 = math.sqrt %32 : vector<8x1xf32>
    %cst_16 = arith.constant 9.99999997E-7 : f32
    %34 = vector.broadcast %cst_16 : f32 to vector<8x1xf32>
    %35 = arith.addf %33, %34 : vector<8x1xf32>
    %cst_17 = arith.constant 1.000000e+00 : f32
    %36 = vector.broadcast %cst_17 : f32 to vector<8x1xf32>
    %37 = arith.divf %36, %35 : vector<8x1xf32>
    %38 = vector.broadcast %37 : vector<8x1xf32> to vector<8x32xf32>
    %39 = arith.mulf %27, %38 : vector<8x32xf32>
    %40 = vector.shape_cast %19 : vector<32xf32> to vector<1x32xf32>
    %41 = vector.broadcast %40 : vector<1x32xf32> to vector<8x32xf32>
    %42 = arith.mulf %41, %39 : vector<8x32xf32>
    %43 = vector.shape_cast %21 : vector<32xf32> to vector<1x32xf32>
    %44 = vector.broadcast %43 : vector<1x32xf32> to vector<8x32xf32>
    %45 = arith.addf %42, %44 : vector<8x32xf32>
    %46 = arith.truncf %45 : vector<8x32xf32> to vector<8x32xbf16>
    %c0_18 = arith.constant 0 : index
    %c0_19 = arith.constant 0 : index
    %47 = vector.load %arg4[%c0_18, %c0_19] : memref<32x96xbf16, #tpu.memory_space<vmem>>, vector<32x96xbf16>
    %cst_20 = arith.constant dense<0.000000e+00> : vector<8x96xf32>
    %48 = tpu.matmul %46, %47, %cst_20 {dimension_numbers = #tpu.dot_dimension_numbers<[1], [0], [0], [1], [0, 0, 1, 1], [], []>} : vector<8x32xbf16>, vector<32x96xbf16>, vector<8x96xf32> -> vector<8x96xf32>
    %c0_21 = arith.constant 0 : index
    %c0_22 = arith.constant 0 : index
    %49 = vector.load %arg5[%c0_21, %c0_22] : memref<1x96xf32, #tpu.memory_space<vmem>>, vector<1x96xf32>
    %50 = vector.broadcast %49 : vector<1x96xf32> to vector<8x96xf32>
    %51 = arith.addf %48, %50 : vector<8x96xf32>
    %52 = vector.extract_strided_slice %51 {offsets = [0, 0], sizes = [8, 32], strides = [1, 1]} : vector<8x96xf32> to vector<8x32xf32>
    %53 = vector.extract_strided_slice %51 {offsets = [0, 32], sizes = [8, 32], strides = [1, 1]} : vector<8x96xf32> to vector<8x32xf32>
    %54 = vector.extract_strided_slice %51 {offsets = [0, 64], sizes = [8, 32], strides = [1, 1]} : vector<8x96xf32> to vector<8x32xf32>
    %c0_23 = arith.constant 0 : index
    %c0_24 = arith.constant 0 : index
    %55 = vector.load %arg6[%c0_23, %c0_24] : memref<32x32xbf16, #tpu.memory_space<vmem>>, vector<32x32xbf16>
    %c0_25 = arith.constant 0 : index
    %c0_26 = arith.constant 0 : index
    %56 = vector.load %arg7[%c0_25, %c0_26] : memref<1x32xf32, #tpu.memory_space<vmem>>, vector<1x32xf32>
    %57 = vector.extract_strided_slice %52 {offsets = [0, 0], sizes = [8, 8], strides = [1, 1]} : vector<8x32xf32> to vector<8x8xf32>
    %58 = vector.extract_strided_slice %52 {offsets = [0, 8], sizes = [8, 8], strides = [1, 1]} : vector<8x32xf32> to vector<8x8xf32>
    %59 = vector.extract_strided_slice %52 {offsets = [0, 16], sizes = [8, 8], strides = [1, 1]} : vector<8x32xf32> to vector<8x8xf32>
    %60 = vector.extract_strided_slice %52 {offsets = [0, 24], sizes = [8, 8], strides = [1, 1]} : vector<8x32xf32> to vector<8x8xf32>
    %61 = vector.shape_cast %57 : vector<8x8xf32> to vector<1x8x8xf32>
    %62 = vector.shape_cast %58 : vector<8x8xf32> to vector<1x8x8xf32>
    %63 = vector.shape_cast %59 : vector<8x8xf32> to vector<1x8x8xf32>
    %64 = vector.shape_cast %60 : vector<8x8xf32> to vector<1x8x8xf32>
    %65 = tpu.concatenate %61, %62, %63, %64 in 0 : vector<1x8x8xf32>, vector<1x8x8xf32>, vector<1x8x8xf32>, vector<1x8x8xf32> -> vector<4x8x8xf32>
    %66 = arith.truncf %65 : vector<4x8x8xf32> to vector<4x8x8xbf16>
    %67 = vector.extract_strided_slice %53 {offsets = [0, 0], sizes = [8, 8], strides = [1, 1]} : vector<8x32xf32> to vector<8x8xf32>
    %68 = vector.extract_strided_slice %53 {offsets = [0, 8], sizes = [8, 8], strides = [1, 1]} : vector<8x32xf32> to vector<8x8xf32>
    %69 = vector.extract_strided_slice %53 {offsets = [0, 16], sizes = [8, 8], strides = [1, 1]} : vector<8x32xf32> to vector<8x8xf32>
    %70 = vector.extract_strided_slice %53 {offsets = [0, 24], sizes = [8, 8], strides = [1, 1]} : vector<8x32xf32> to vector<8x8xf32>
    %71 = vector.shape_cast %67 : vector<8x8xf32> to vector<1x8x8xf32>
    %72 = vector.shape_cast %68 : vector<8x8xf32> to vector<1x8x8xf32>
    %73 = vector.shape_cast %69 : vector<8x8xf32> to vector<1x8x8xf32>
    %74 = vector.shape_cast %70 : vector<8x8xf32> to vector<1x8x8xf32>
    %75 = tpu.concatenate %71, %72, %73, %74 in 0 : vector<1x8x8xf32>, vector<1x8x8xf32>, vector<1x8x8xf32>, vector<1x8x8xf32> -> vector<4x8x8xf32>
    %76 = arith.truncf %75 : vector<4x8x8xf32> to vector<4x8x8xbf16>
    %77 = vector.extract_strided_slice %54 {offsets = [0, 0], sizes = [8, 8], strides = [1, 1]} : vector<8x32xf32> to vector<8x8xf32>
    %78 = vector.extract_strided_slice %54 {offsets = [0, 8], sizes = [8, 8], strides = [1, 1]} : vector<8x32xf32> to vector<8x8xf32>
    %79 = vector.extract_strided_slice %54 {offsets = [0, 16], sizes = [8, 8], strides = [1, 1]} : vector<8x32xf32> to vector<8x8xf32>
    %80 = vector.extract_strided_slice %54 {offsets = [0, 24], sizes = [8, 8], strides = [1, 1]} : vector<8x32xf32> to vector<8x8xf32>
    %81 = vector.shape_cast %77 : vector<8x8xf32> to vector<1x8x8xf32>
    %82 = vector.shape_cast %78 : vector<8x8xf32> to vector<1x8x8xf32>
    %83 = vector.shape_cast %79 : vector<8x8xf32> to vector<1x8x8xf32>
    %84 = vector.shape_cast %80 : vector<8x8xf32> to vector<1x8x8xf32>
    %85 = tpu.concatenate %81, %82, %83, %84 in 0 : vector<1x8x8xf32>, vector<1x8x8xf32>, vector<1x8x8xf32>, vector<1x8x8xf32> -> vector<4x8x8xf32>
    %86 = arith.truncf %85 : vector<4x8x8xf32> to vector<4x8x8xbf16>
    "tpu.trace_start"() <{level = 10 : i32, message = "htk,hsk->hts"}> : () -> ()
    %cst_27 = arith.constant dense<0.000000e+00> : vector<4x8x8xf32>
    %87 = tpu.matmul %66, %76, %cst_27 {dimension_numbers = #tpu.dot_dimension_numbers<[2], [2], [1], [1], [0, 0, 0, 1, 1, 1], [0], [0]>} : vector<4x8x8xbf16>, vector<4x8x8xbf16>, vector<4x8x8xf32> -> vector<4x8x8xf32>
    "tpu.trace_stop"() : () -> ()
    %88 = vector.shape_cast %9 : vector<8x8xf32> to vector<1x8x8xf32>
    %89 = vector.broadcast %88 : vector<1x8x8xf32> to vector<4x8x8xf32>
    %90 = arith.addf %87, %89 : vector<4x8x8xf32>
    %cst_28 = arith.constant dense<0xFF800000> : vector<4x8xf32>
    %91 = vector.multi_reduction <maximumf>, %90, %cst_28 [2] : vector<4x8x8xf32> to vector<4x8xf32>
    %92 = vector.shape_cast %91 : vector<4x8xf32> to vector<4x8x1xf32>
    %93 = vector.broadcast %92 : vector<4x8x1xf32> to vector<4x8x8xf32>
    %94 = arith.subf %90, %93 : vector<4x8x8xf32>
    %95 = math.exp %94 : vector<4x8x8xf32>
    %cst_29 = arith.constant dense<0.000000e+00> : vector<4x8xf32>
    %96 = vector.multi_reduction <add>, %95, %cst_29 [2] : vector<4x8x8xf32> to vector<4x8xf32>
    %97 = vector.shape_cast %96 : vector<4x8xf32> to vector<4x8x1xf32>
    %98 = tpu.reciprocal %97 {approx = true} : vector<4x8x1xf32> -> vector<4x8x1xf32>
    %99 = vector.broadcast %98 : vector<4x8x1xf32> to vector<4x8x8xf32>
    %100 = arith.mulf %95, %99 : vector<4x8x8xf32>
    %101 = arith.truncf %100 : vector<4x8x8xf32> to vector<4x8x8xbf16>
    "tpu.trace_start"() <{level = 10 : i32, message = "hts,hsk->htk"}> : () -> ()
    %cst_30 = arith.constant dense<0.000000e+00> : vector<4x8x8xf32>
    %102 = tpu.matmul %101, %86, %cst_30 {dimension_numbers = #tpu.dot_dimension_numbers<[2], [1], [1], [2], [0, 0, 0, 1, 1, 2], [0], [0]>} : vector<4x8x8xbf16>, vector<4x8x8xbf16>, vector<4x8x8xf32> -> vector<4x8x8xf32>
    "tpu.trace_stop"() : () -> ()
    %103 = vector.extract_strided_slice %102 {offsets = [0, 0, 0], sizes = [1, 8, 8], strides = [1, 1, 1]} : vector<4x8x8xf32> to vector<1x8x8xf32>
    %104 = vector.shape_cast %103 : vector<1x8x8xf32> to vector<8x8xf32>
    %105 = vector.extract_strided_slice %102 {offsets = [1, 0, 0], sizes = [1, 8, 8], strides = [1, 1, 1]} : vector<4x8x8xf32> to vector<1x8x8xf32>
    %106 = vector.shape_cast %105 : vector<1x8x8xf32> to vector<8x8xf32>
    %107 = vector.extract_strided_slice %102 {offsets = [2, 0, 0], sizes = [1, 8, 8], strides = [1, 1, 1]} : vector<4x8x8xf32> to vector<1x8x8xf32>
    %108 = vector.shape_cast %107 : vector<1x8x8xf32> to vector<8x8xf32>
    %109 = vector.extract_strided_slice %102 {offsets = [3, 0, 0], sizes = [1, 8, 8], strides = [1, 1, 1]} : vector<4x8x8xf32> to vector<1x8x8xf32>
    %110 = vector.shape_cast %109 : vector<1x8x8xf32> to vector<8x8xf32>
    %111 = tpu.concatenate %104, %106, %108, %110 in 1 : vector<8x8xf32>, vector<8x8xf32>, vector<8x8xf32>, vector<8x8xf32> -> vector<8x32xf32>
    %112 = arith.truncf %111 : vector<8x32xf32> to vector<8x32xbf16>
    %cst_31 = arith.constant dense<0.000000e+00> : vector<8x32xf32>
    %113 = tpu.matmul %112, %55, %cst_31 {dimension_numbers = #tpu.dot_dimension_numbers<[1], [0], [0], [1], [0, 0, 1, 1], [], []>} : vector<8x32xbf16>, vector<32x32xbf16>, vector<8x32xf32> -> vector<8x32xf32>
    %114 = vector.broadcast %56 : vector<1x32xf32> to vector<8x32xf32>
    %115 = arith.addf %113, %114 : vector<8x32xf32>
    %116 = arith.addf %1, %115 : vector<8x32xf32>
    %c1 = arith.constant 1 : index
    %c0_32 = arith.constant 0 : index
    %117 = vector.load %arg18[%c1, %c0_32] : memref<3x32xf32, #tpu.memory_space<vmem>>, vector<1x32xf32>
    %118 = vector.shape_cast %117 : vector<1x32xf32> to vector<32xf32>
    %c1_33 = arith.constant 1 : index
    %c0_34 = arith.constant 0 : index
    %119 = vector.load %arg19[%c1_33, %c0_34] : memref<3x32xf32, #tpu.memory_space<vmem>>, vector<1x32xf32>
    %120 = vector.shape_cast %119 : vector<1x32xf32> to vector<32xf32>
    %cst_35 = arith.constant dense<0.000000e+00> : vector<8xf32>
    %121 = vector.multi_reduction <add>, %116, %cst_35 [1] : vector<8x32xf32> to vector<8xf32>
    %122 = vector.shape_cast %121 : vector<8xf32> to vector<8x1xf32>
    %cst_36 = arith.constant 3.200000e+01 : f32
    %123 = vector.broadcast %cst_36 : f32 to vector<8x1xf32>
    %124 = arith.divf %122, %123 : vector<8x1xf32>
    %125 = vector.broadcast %124 : vector<8x1xf32> to vector<8x32xf32>
    %126 = arith.subf %116, %125 : vector<8x32xf32>
    %127 = arith.mulf %126, %126 : vector<8x32xf32>
    %cst_37 = arith.constant dense<0.000000e+00> : vector<8xf32>
    %128 = vector.multi_reduction <add>, %127, %cst_37 [1] : vector<8x32xf32> to vector<8xf32>
    %129 = vector.shape_cast %128 : vector<8xf32> to vector<8x1xf32>
    %cst_38 = arith.constant 0.0322580636 : f32
    %130 = vector.broadcast %cst_38 : f32 to vector<8x1xf32>
    %131 = arith.mulf %129, %130 : vector<8x1xf32>
    %132 = math.sqrt %131 : vector<8x1xf32>
    %cst_39 = arith.constant 9.99999997E-7 : f32
    %133 = vector.broadcast %cst_39 : f32 to vector<8x1xf32>
    %134 = arith.addf %132, %133 : vector<8x1xf32>
    %cst_40 = arith.constant 1.000000e+00 : f32
    %135 = vector.broadcast %cst_40 : f32 to vector<8x1xf32>
    %136 = arith.divf %135, %134 : vector<8x1xf32>
    %137 = vector.broadcast %136 : vector<8x1xf32> to vector<8x32xf32>
    %138 = arith.mulf %126, %137 : vector<8x32xf32>
    %139 = vector.shape_cast %118 : vector<32xf32> to vector<1x32xf32>
    %140 = vector.broadcast %139 : vector<1x32xf32> to vector<8x32xf32>
    %141 = arith.mulf %140, %138 : vector<8x32xf32>
    %142 = vector.shape_cast %120 : vector<32xf32> to vector<1x32xf32>
    %143 = vector.broadcast %142 : vector<1x32xf32> to vector<8x32xf32>
    %144 = arith.addf %141, %143 : vector<8x32xf32>
    %145 = arith.truncf %144 : vector<8x32xf32> to vector<8x32xbf16>
    %c0_41 = arith.constant 0 : index
    %c0_42 = arith.constant 0 : index
    %146 = vector.load %arg8[%c0_41, %c0_42] : memref<32x32xbf16, #tpu.memory_space<vmem>>, vector<32x32xbf16>
    %cst_43 = arith.constant dense<0.000000e+00> : vector<8x32xf32>
    %147 = tpu.matmul %145, %146, %cst_43 {dimension_numbers = #tpu.dot_dimension_numbers<[1], [0], [0], [1], [0, 0, 1, 1], [], []>} : vector<8x32xbf16>, vector<32x32xbf16>, vector<8x32xf32> -> vector<8x32xf32>
    %c0_44 = arith.constant 0 : index
    %c0_45 = arith.constant 0 : index
    %148 = vector.load %arg9[%c0_44, %c0_45] : memref<1x32xf32, #tpu.memory_space<vmem>>, vector<1x32xf32>
    %149 = vector.broadcast %148 : vector<1x32xf32> to vector<8x32xf32>
    %150 = arith.addf %147, %149 : vector<8x32xf32>
    %151 = arith.truncf %3 : vector<10x32xf32> to vector<10x32xbf16>
    %c0_46 = arith.constant 0 : index
    %c0_47 = arith.constant 0 : index
    %152 = vector.load %arg10[%c0_46, %c0_47] : memref<32x64xbf16, #tpu.memory_space<vmem>>, vector<32x64xbf16>
    %cst_48 = arith.constant dense<0.000000e+00> : vector<10x64xf32>
    %153 = tpu.matmul %151, %152, %cst_48 {dimension_numbers = #tpu.dot_dimension_numbers<[1], [0], [0], [1], [0, 0, 1, 1], [], []>} : vector<10x32xbf16>, vector<32x64xbf16>, vector<10x64xf32> -> vector<10x64xf32>
    %c0_49 = arith.constant 0 : index
    %c0_50 = arith.constant 0 : index
    %154 = vector.load %arg11[%c0_49, %c0_50] : memref<1x64xf32, #tpu.memory_space<vmem>>, vector<1x64xf32>
    %155 = vector.broadcast %154 : vector<1x64xf32> to vector<10x64xf32>
    %156 = arith.addf %153, %155 : vector<10x64xf32>
    %157 = vector.extract_strided_slice %156 {offsets = [0, 0], sizes = [10, 32], strides = [1, 1]} : vector<10x64xf32> to vector<10x32xf32>
    %158 = vector.extract_strided_slice %156 {offsets = [0, 32], sizes = [10, 32], strides = [1, 1]} : vector<10x64xf32> to vector<10x32xf32>
    %c0_51 = arith.constant 0 : index
    %c0_52 = arith.constant 0 : index
    %159 = vector.load %arg12[%c0_51, %c0_52] : memref<32x32xbf16, #tpu.memory_space<vmem>>, vector<32x32xbf16>
    %c0_53 = arith.constant 0 : index
    %c0_54 = arith.constant 0 : index
    %160 = vector.load %arg13[%c0_53, %c0_54] : memref<1x32xf32, #tpu.memory_space<vmem>>, vector<1x32xf32>
    %161 = vector.extract_strided_slice %150 {offsets = [0, 0], sizes = [8, 8], strides = [1, 1]} : vector<8x32xf32> to vector<8x8xf32>
    %162 = vector.extract_strided_slice %150 {offsets = [0, 8], sizes = [8, 8], strides = [1, 1]} : vector<8x32xf32> to vector<8x8xf32>
    %163 = vector.extract_strided_slice %150 {offsets = [0, 16], sizes = [8, 8], strides = [1, 1]} : vector<8x32xf32> to vector<8x8xf32>
    %164 = vector.extract_strided_slice %150 {offsets = [0, 24], sizes = [8, 8], strides = [1, 1]} : vector<8x32xf32> to vector<8x8xf32>
    %165 = vector.shape_cast %161 : vector<8x8xf32> to vector<1x8x8xf32>
    %166 = vector.shape_cast %162 : vector<8x8xf32> to vector<1x8x8xf32>
    %167 = vector.shape_cast %163 : vector<8x8xf32> to vector<1x8x8xf32>
    %168 = vector.shape_cast %164 : vector<8x8xf32> to vector<1x8x8xf32>
    %169 = tpu.concatenate %165, %166, %167, %168 in 0 : vector<1x8x8xf32>, vector<1x8x8xf32>, vector<1x8x8xf32>, vector<1x8x8xf32> -> vector<4x8x8xf32>
    %170 = arith.truncf %169 : vector<4x8x8xf32> to vector<4x8x8xbf16>
    %171 = vector.extract_strided_slice %157 {offsets = [0, 0], sizes = [10, 8], strides = [1, 1]} : vector<10x32xf32> to vector<10x8xf32>
    %172 = vector.extract_strided_slice %157 {offsets = [0, 8], sizes = [10, 8], strides = [1, 1]} : vector<10x32xf32> to vector<10x8xf32>
    %173 = vector.extract_strided_slice %157 {offsets = [0, 16], sizes = [10, 8], strides = [1, 1]} : vector<10x32xf32> to vector<10x8xf32>
    %174 = vector.extract_strided_slice %157 {offsets = [0, 24], sizes = [10, 8], strides = [1, 1]} : vector<10x32xf32> to vector<10x8xf32>
    %175 = vector.shape_cast %171 : vector<10x8xf32> to vector<1x10x8xf32>
    %176 = vector.shape_cast %172 : vector<10x8xf32> to vector<1x10x8xf32>
    %177 = vector.shape_cast %173 : vector<10x8xf32> to vector<1x10x8xf32>
    %178 = vector.shape_cast %174 : vector<10x8xf32> to vector<1x10x8xf32>
    %179 = tpu.concatenate %175, %176, %177, %178 in 0 : vector<1x10x8xf32>, vector<1x10x8xf32>, vector<1x10x8xf32>, vector<1x10x8xf32> -> vector<4x10x8xf32>
    %180 = arith.truncf %179 : vector<4x10x8xf32> to vector<4x10x8xbf16>
    %181 = vector.extract_strided_slice %158 {offsets = [0, 0], sizes = [10, 8], strides = [1, 1]} : vector<10x32xf32> to vector<10x8xf32>
    %182 = vector.extract_strided_slice %158 {offsets = [0, 8], sizes = [10, 8], strides = [1, 1]} : vector<10x32xf32> to vector<10x8xf32>
    %183 = vector.extract_strided_slice %158 {offsets = [0, 16], sizes = [10, 8], strides = [1, 1]} : vector<10x32xf32> to vector<10x8xf32>
    %184 = vector.extract_strided_slice %158 {offsets = [0, 24], sizes = [10, 8], strides = [1, 1]} : vector<10x32xf32> to vector<10x8xf32>
    %185 = vector.shape_cast %181 : vector<10x8xf32> to vector<1x10x8xf32>
    %186 = vector.shape_cast %182 : vector<10x8xf32> to vector<1x10x8xf32>
    %187 = vector.shape_cast %183 : vector<10x8xf32> to vector<1x10x8xf32>
    %188 = vector.shape_cast %184 : vector<10x8xf32> to vector<1x10x8xf32>
    %189 = tpu.concatenate %185, %186, %187, %188 in 0 : vector<1x10x8xf32>, vector<1x10x8xf32>, vector<1x10x8xf32>, vector<1x10x8xf32> -> vector<4x10x8xf32>
    %190 = arith.truncf %189 : vector<4x10x8xf32> to vector<4x10x8xbf16>
    "tpu.trace_start"() <{level = 10 : i32, message = "htk,hsk->hts"}> : () -> ()
    %cst_55 = arith.constant dense<0.000000e+00> : vector<4x8x10xf32>
    %191 = tpu.matmul %170, %180, %cst_55 {dimension_numbers = #tpu.dot_dimension_numbers<[2], [2], [1], [1], [0, 0, 0, 1, 1, 1], [0], [0]>} : vector<4x8x8xbf16>, vector<4x10x8xbf16>, vector<4x8x10xf32> -> vector<4x8x10xf32>
    "tpu.trace_stop"() : () -> ()
    %192 = vector.shape_cast %17 : vector<1x10xf32> to vector<1x1x10xf32>
    %193 = vector.broadcast %192 : vector<1x1x10xf32> to vector<4x8x10xf32>
    %194 = arith.addf %191, %193 : vector<4x8x10xf32>
    %cst_56 = arith.constant dense<0xFF800000> : vector<4x8xf32>
    %195 = vector.multi_reduction <maximumf>, %194, %cst_56 [2] : vector<4x8x10xf32> to vector<4x8xf32>
    %196 = vector.shape_cast %195 : vector<4x8xf32> to vector<4x8x1xf32>
    %197 = vector.broadcast %196 : vector<4x8x1xf32> to vector<4x8x10xf32>
    %198 = arith.subf %194, %197 : vector<4x8x10xf32>
    %199 = math.exp %198 : vector<4x8x10xf32>
    %cst_57 = arith.constant dense<0.000000e+00> : vector<4x8xf32>
    %200 = vector.multi_reduction <add>, %199, %cst_57 [2] : vector<4x8x10xf32> to vector<4x8xf32>
    %201 = vector.shape_cast %200 : vector<4x8xf32> to vector<4x8x1xf32>
    %202 = tpu.reciprocal %201 {approx = true} : vector<4x8x1xf32> -> vector<4x8x1xf32>
    %203 = vector.broadcast %202 : vector<4x8x1xf32> to vector<4x8x10xf32>
    %204 = arith.mulf %199, %203 : vector<4x8x10xf32>
    %205 = arith.truncf %204 : vector<4x8x10xf32> to vector<4x8x10xbf16>
    "tpu.trace_start"() <{level = 10 : i32, message = "hts,hsk->htk"}> : () -> ()
    %cst_58 = arith.constant dense<0.000000e+00> : vector<4x8x8xf32>
    %206 = tpu.matmul %205, %190, %cst_58 {dimension_numbers = #tpu.dot_dimension_numbers<[2], [1], [1], [2], [0, 0, 0, 1, 1, 2], [0], [0]>} : vector<4x8x10xbf16>, vector<4x10x8xbf16>, vector<4x8x8xf32> -> vector<4x8x8xf32>
    "tpu.trace_stop"() : () -> ()
    %207 = vector.extract_strided_slice %206 {offsets = [0, 0, 0], sizes = [1, 8, 8], strides = [1, 1, 1]} : vector<4x8x8xf32> to vector<1x8x8xf32>
    %208 = vector.shape_cast %207 : vector<1x8x8xf32> to vector<8x8xf32>
    %209 = vector.extract_strided_slice %206 {offsets = [1, 0, 0], sizes = [1, 8, 8], strides = [1, 1, 1]} : vector<4x8x8xf32> to vector<1x8x8xf32>
    %210 = vector.shape_cast %209 : vector<1x8x8xf32> to vector<8x8xf32>
    %211 = vector.extract_strided_slice %206 {offsets = [2, 0, 0], sizes = [1, 8, 8], strides = [1, 1, 1]} : vector<4x8x8xf32> to vector<1x8x8xf32>
    %212 = vector.shape_cast %211 : vector<1x8x8xf32> to vector<8x8xf32>
    %213 = vector.extract_strided_slice %206 {offsets = [3, 0, 0], sizes = [1, 8, 8], strides = [1, 1, 1]} : vector<4x8x8xf32> to vector<1x8x8xf32>
    %214 = vector.shape_cast %213 : vector<1x8x8xf32> to vector<8x8xf32>
    %215 = tpu.concatenate %208, %210, %212, %214 in 1 : vector<8x8xf32>, vector<8x8xf32>, vector<8x8xf32>, vector<8x8xf32> -> vector<8x32xf32>
    %216 = arith.truncf %215 : vector<8x32xf32> to vector<8x32xbf16>
    %cst_59 = arith.constant dense<0.000000e+00> : vector<8x32xf32>
    %217 = tpu.matmul %216, %159, %cst_59 {dimension_numbers = #tpu.dot_dimension_numbers<[1], [0], [0], [1], [0, 0, 1, 1], [], []>} : vector<8x32xbf16>, vector<32x32xbf16>, vector<8x32xf32> -> vector<8x32xf32>
    %218 = vector.broadcast %160 : vector<1x32xf32> to vector<8x32xf32>
    %219 = arith.addf %217, %218 : vector<8x32xf32>
    %220 = arith.addf %116, %219 : vector<8x32xf32>
    %c2 = arith.constant 2 : index
    %c0_60 = arith.constant 0 : index
    %221 = vector.load %arg18[%c2, %c0_60] : memref<3x32xf32, #tpu.memory_space<vmem>>, vector<1x32xf32>
    %222 = vector.shape_cast %221 : vector<1x32xf32> to vector<32xf32>
    %c2_61 = arith.constant 2 : index
    %c0_62 = arith.constant 0 : index
    %223 = vector.load %arg19[%c2_61, %c0_62] : memref<3x32xf32, #tpu.memory_space<vmem>>, vector<1x32xf32>
    %224 = vector.shape_cast %223 : vector<1x32xf32> to vector<32xf32>
    %cst_63 = arith.constant dense<0.000000e+00> : vector<8xf32>
    %225 = vector.multi_reduction <add>, %220, %cst_63 [1] : vector<8x32xf32> to vector<8xf32>
    %226 = vector.shape_cast %225 : vector<8xf32> to vector<8x1xf32>
    %cst_64 = arith.constant 3.200000e+01 : f32
    %227 = vector.broadcast %cst_64 : f32 to vector<8x1xf32>
    %228 = arith.divf %226, %227 : vector<8x1xf32>
    %229 = vector.broadcast %228 : vector<8x1xf32> to vector<8x32xf32>
    %230 = arith.subf %220, %229 : vector<8x32xf32>
    %231 = arith.mulf %230, %230 : vector<8x32xf32>
    %cst_65 = arith.constant dense<0.000000e+00> : vector<8xf32>
    %232 = vector.multi_reduction <add>, %231, %cst_65 [1] : vector<8x32xf32> to vector<8xf32>
    %233 = vector.shape_cast %232 : vector<8xf32> to vector<8x1xf32>
    %cst_66 = arith.constant 0.0322580636 : f32
    %234 = vector.broadcast %cst_66 : f32 to vector<8x1xf32>
    %235 = arith.mulf %233, %234 : vector<8x1xf32>
    %236 = math.sqrt %235 : vector<8x1xf32>
    %cst_67 = arith.constant 9.99999997E-7 : f32
    %237 = vector.broadcast %cst_67 : f32 to vector<8x1xf32>
    %238 = arith.addf %236, %237 : vector<8x1xf32>
    %cst_68 = arith.constant 1.000000e+00 : f32
    %239 = vector.broadcast %cst_68 : f32 to vector<8x1xf32>
    %240 = arith.divf %239, %238 : vector<8x1xf32>
    %241 = vector.broadcast %240 : vector<8x1xf32> to vector<8x32xf32>
    %242 = arith.mulf %230, %241 : vector<8x32xf32>
    %243 = vector.shape_cast %222 : vector<32xf32> to vector<1x32xf32>
    %244 = vector.broadcast %243 : vector<1x32xf32> to vector<8x32xf32>
    %245 = arith.mulf %244, %242 : vector<8x32xf32>
    %246 = vector.shape_cast %224 : vector<32xf32> to vector<1x32xf32>
    %247 = vector.broadcast %246 : vector<1x32xf32> to vector<8x32xf32>
    %248 = arith.addf %245, %247 : vector<8x32xf32>
    %249 = arith.truncf %248 : vector<8x32xf32> to vector<8x32xbf16>
    %c0_69 = arith.constant 0 : index
    %c0_70 = arith.constant 0 : index
    %250 = vector.load %arg14[%c0_69, %c0_70] : memref<32x64xbf16, #tpu.memory_space<vmem>>, vector<32x64xbf16>
    %cst_71 = arith.constant dense<0.000000e+00> : vector<8x64xf32>
    %251 = tpu.matmul %249, %250, %cst_71 {dimension_numbers = #tpu.dot_dimension_numbers<[1], [0], [0], [1], [0, 0, 1, 1], [], []>} : vector<8x32xbf16>, vector<32x64xbf16>, vector<8x64xf32> -> vector<8x64xf32>
    %c0_72 = arith.constant 0 : index
    %c0_73 = arith.constant 0 : index
    %252 = vector.load %arg15[%c0_72, %c0_73] : memref<1x64xf32, #tpu.memory_space<vmem>>, vector<1x64xf32>
    %253 = vector.broadcast %252 : vector<1x64xf32> to vector<8x64xf32>
    %254 = arith.addf %251, %253 : vector<8x64xf32>
    %cst_74 = arith.constant 0.000000e+00 : f32
    %255 = vector.broadcast %cst_74 : f32 to vector<8x64xf32>
    %256 = arith.maximumf %254, %255 : vector<8x64xf32>
    %257 = arith.truncf %256 : vector<8x64xf32> to vector<8x64xbf16>
    %c0_75 = arith.constant 0 : index
    %c0_76 = arith.constant 0 : index
    %258 = vector.load %arg16[%c0_75, %c0_76] : memref<64x32xbf16, #tpu.memory_space<vmem>>, vector<64x32xbf16>
    %cst_77 = arith.constant dense<0.000000e+00> : vector<8x32xf32>
    %259 = tpu.matmul %257, %258, %cst_77 {dimension_numbers = #tpu.dot_dimension_numbers<[1], [0], [0], [1], [0, 0, 1, 1], [], []>} : vector<8x64xbf16>, vector<64x32xbf16>, vector<8x32xf32> -> vector<8x32xf32>
    %c0_78 = arith.constant 0 : index
    %c0_79 = arith.constant 0 : index
    %260 = vector.load %arg17[%c0_78, %c0_79] : memref<1x32xf32, #tpu.memory_space<vmem>>, vector<1x32xf32>
    %261 = vector.broadcast %260 : vector<1x32xf32> to vector<8x32xf32>
    %262 = arith.addf %259, %261 : vector<8x32xf32>
    %263 = arith.addf %220, %262 : vector<8x32xf32>
    %c0_80 = arith.constant 0 : index
    %c0_81 = arith.constant 0 : index
    %c0_82 = arith.constant 0 : index
    %264 = vector.load %arg20[%c0_80, %c0_81, %c0_82] : memref<1x8x32xf32, #tpu.memory_space<vmem>>, vector<1x8x32xf32>
    %265 = vector.shape_cast %264 : vector<1x8x32xf32> to vector<8x32xf32>
    %266 = vector.shape_cast %263 : vector<8x32xf32> to vector<1x8x32xf32>
    tpu.vector_store %arg20[%c0_80, %c0_81, %c0_82], %266 {strides = array<i32>} : memref<1x8x32xf32, #tpu.memory_space<vmem>>, vector<1x8x32xf32>,
    return
  }
  func.func @transform_0(%arg0: i32, %arg1: memref<2xi32, #tpu.memory_space<smem>>) -> (i32, i32, i32) {
    %c0_i32 = arith.constant 0 : i32
    %c0_i32_0 = arith.constant 0 : i32
    %c0_i32_1 = arith.constant 0 : i32
    return %arg0, %c0_i32, %c0_i32_0 : i32, i32, i32
  }
  func.func @transform_1(%arg0: i32, %arg1: memref<2xi32, #tpu.memory_space<smem>>) -> (i32, i32, i32) {
    %c0_i32 = arith.constant 0 : i32
    %c0_i32_0 = arith.constant 0 : i32
    %c0_i32_1 = arith.constant 0 : i32
    return %arg0, %c0_i32, %c0_i32_0 : i32, i32, i32
  }
  func.func @transform_2(%arg0: i32, %arg1: memref<2xi32, #tpu.memory_space<smem>>) -> (i32, i32) {
    %c0_i32 = arith.constant 0 : i32
    %c0_i32_0 = arith.constant 0 : i32
    %c0_i32_1 = arith.constant 0 : i32
    return %c0_i32, %c0_i32_0 : i32, i32
  }
  func.func @transform_3(%arg0: i32, %arg1: memref<2xi32, #tpu.memory_space<smem>>) -> (i32, i32) {
    %c0_i32 = arith.constant 0 : i32
    %c0_i32_0 = arith.constant 0 : i32
    %c0_i32_1 = arith.constant 0 : i32
    return %c0_i32, %c0_i32_0 : i32, i32
  }
  func.func @transform_4(%arg0: i32, %arg1: memref<2xi32, #tpu.memory_space<smem>>) -> (i32, i32) {
    %c0_i32 = arith.constant 0 : i32
    %c0_i32_0 = arith.constant 0 : i32
    %c0_i32_1 = arith.constant 0 : i32
    return %c0_i32, %c0_i32_0 : i32, i32
  }
  func.func @transform_5(%arg0: i32, %arg1: memref<2xi32, #tpu.memory_space<smem>>) -> (i32, i32) {
    %c0_i32 = arith.constant 0 : i32
    %c0_i32_0 = arith.constant 0 : i32
    %c0_i32_1 = arith.constant 0 : i32
    return %c0_i32, %c0_i32_0 : i32, i32
  }
  func.func @transform_6(%arg0: i32, %arg1: memref<2xi32, #tpu.memory_space<smem>>) -> (i32, i32) {
    %c0_i32 = arith.constant 0 : i32
    %c0_i32_0 = arith.constant 0 : i32
    %c0_i32_1 = arith.constant 0 : i32
    return %c0_i32, %c0_i32_0 : i32, i32
  }
  func.func @transform_7(%arg0: i32, %arg1: memref<2xi32, #tpu.memory_space<smem>>) -> (i32, i32) {
    %c0_i32 = arith.constant 0 : i32
    %c0_i32_0 = arith.constant 0 : i32
    %c0_i32_1 = arith.constant 0 : i32
    return %c0_i32, %c0_i32_0 : i32, i32
  }
  func.func @transform_8(%arg0: i32, %arg1: memref<2xi32, #tpu.memory_space<smem>>) -> (i32, i32) {
    %c0_i32 = arith.constant 0 : i32
    %c0_i32_0 = arith.constant 0 : i32
    %c0_i32_1 = arith.constant 0 : i32
    return %c0_i32, %c0_i32_0 : i32, i32
  }
  func.func @transform_9(%arg0: i32, %arg1: memref<2xi32, #tpu.memory_space<smem>>) -> (i32, i32) {
    %c0_i32 = arith.constant 0 : i32
    %c0_i32_0 = arith.constant 0 : i32
    %c0_i32_1 = arith.constant 0 : i32
    return %c0_i32, %c0_i32_0 : i32, i32
  }
  func.func @transform_10(%arg0: i32, %arg1: memref<2xi32, #tpu.memory_space<smem>>) -> (i32, i32) {
    %c0_i32 = arith.constant 0 : i32
    %c0_i32_0 = arith.constant 0 : i32
    %c0_i32_1 = arith.constant 0 : i32
    return %c0_i32, %c0_i32_0 : i32, i32
  }
  func.func @transform_11(%arg0: i32, %arg1: memref<2xi32, #tpu.memory_space<smem>>) -> (i32, i32) {
    %c0_i32 = arith.constant 0 : i32
    %c0_i32_0 = arith.constant 0 : i32
    %c0_i32_1 = arith.constant 0 : i32
    return %c0_i32, %c0_i32_0 : i32, i32
  }
  func.func @transform_12(%arg0: i32, %arg1: memref<2xi32, #tpu.memory_space<smem>>) -> (i32, i32) {
    %c0_i32 = arith.constant 0 : i32
    %c0_i32_0 = arith.constant 0 : i32
    %c0_i32_1 = arith.constant 0 : i32
    return %c0_i32, %c0_i32_0 : i32, i32
  }
  func.func @transform_13(%arg0: i32, %arg1: memref<2xi32, #tpu.memory_space<smem>>) -> (i32, i32) {
    %c0_i32 = arith.constant 0 : i32
    %c0_i32_0 = arith.constant 0 : i32
    %c0_i32_1 = arith.constant 0 : i32
    return %c0_i32, %c0_i32_0 : i32, i32
  }
  func.func @transform_14(%arg0: i32, %arg1: memref<2xi32, #tpu.memory_space<smem>>) -> (i32, i32) {
    %c0_i32 = arith.constant 0 : i32
    %c0_i32_0 = arith.constant 0 : i32
    %c0_i32_1 = arith.constant 0 : i32
    return %c0_i32, %c0_i32_0 : i32, i32
  }
  func.func @transform_15(%arg0: i32, %arg1: memref<2xi32, #tpu.memory_space<smem>>) -> (i32, i32) {
    %c0_i32 = arith.constant 0 : i32
    %c0_i32_0 = arith.constant 0 : i32
    %c0_i32_1 = arith.constant 0 : i32
    return %c0_i32, %c0_i32_0 : i32, i32
  }
  func.func @transform_16(%arg0: i32, %arg1: memref<2xi32, #tpu.memory_space<smem>>) -> (i32, i32) {
    %c0_i32 = arith.constant 0 : i32
    %c0_i32_0 = arith.constant 0 : i32
    %c0_i32_1 = arith.constant 0 : i32
    return %c0_i32, %c0_i32_0 : i32, i32
  }
  func.func @transform_17(%arg0: i32, %arg1: memref<2xi32, #tpu.memory_space<smem>>) -> (i32, i32) {
    %c0_i32 = arith.constant 0 : i32
    %c0_i32_0 = arith.constant 0 : i32
    %c0_i32_1 = arith.constant 0 : i32
    return %c0_i32, %c0_i32_0 : i32, i32
  }
  func.func @transform_18(%arg0: i32, %arg1: memref<2xi32, #tpu.memory_space<smem>>) -> (i32, i32, i32) {
    %c0_i32 = arith.constant 0 : i32
    %c0_i32_0 = arith.constant 0 : i32
    %c0_i32_1 = arith.constant 0 : i32
    return %arg0, %c0_i32, %c0_i32_0 : i32, i32, i32
  }
}

</mosaic_0001>

<llo_original>
// kernel: tpu_custom_call.1
$region0: #{tpu_custom_call.1}
  #allocation0 [shape = 'u32[]', space=smem, size = 0x4, offset = 0x4, fixed_abs, tag = 'smem constant byte address 0x4 - core index']
  #allocation1 [shape = 'u32[144,128]{1,0:T(1,128)}', space=vmem, size = 0x12000, scoped, tag = 'internal scratch']
  #allocation2 [shape = 's32[1]{0}', space=sflag, size = 0x4, scoped, tag = 'scoped memory for tpu_custom_call.1']
  #allocation3 [shape = 'u8[512]{0}', space=smem, size = 0x200, scoped, tag = 'prefetched SMEM operand 0']
  %s0 = inlined_call_operand.hbm [shape: s32[2], index: 0, kind: input, shape index: {}]
  %s1 = inlined_call_operand.vmem [shape: f32[2,8,32], index: 1, kind: input, shape index: {}]
  %s2 = inlined_call_operand.vmem [shape: f32[2,10,32], index: 2, kind: input, shape index: {}]
  %s3 = inlined_call_operand.vmem [shape: bf16[32,96], index: 3, kind: input, shape index: {}]
  %s4 = inlined_call_operand.hbm [shape: f32[1,96], index: 4, kind: input, shape index: {}]
  %s5 = inlined_call_operand.vmem [shape: bf16[32,32], index: 5, kind: input, shape index: {}]
  %s6 = inlined_call_operand.hbm [shape: f32[1,32], index: 6, kind: input, shape index: {}]
  %s7 = inlined_call_operand.vmem [shape: bf16[32,32], index: 7, kind: input, shape index: {}]
  %s8 = inlined_call_operand.hbm [shape: f32[1,32], index: 8, kind: input, shape index: {}]
  %s9 = inlined_call_operand.vmem [shape: bf16[32,64], index: 9, kind: input, shape index: {}]
  %s10 = inlined_call_operand.hbm [shape: f32[1,64], index: 10, kind: input, shape index: {}]
  %s11 = inlined_call_operand.vmem [shape: bf16[32,32], index: 11, kind: input, shape index: {}]
  %s12 = inlined_call_operand.vmem [shape: f32[1,32], index: 12, kind: input, shape index: {}]
  %s13 = inlined_call_operand.vmem [shape: bf16[32,64], index: 13, kind: input, shape index: {}]
  %s14 = inlined_call_operand.vmem [shape: f32[1,64], index: 14, kind: input, shape index: {}]
  %s15 = inlined_call_operand.vmem [shape: bf16[64,32], index: 15, kind: input, shape index: {}]
  %s16 = inlined_call_operand.vmem [shape: f32[1,32], index: 16, kind: input, shape index: {}]
  %s17 = inlined_call_operand.vmem [shape: f32[3,32], index: 17, kind: input, shape index: {}]
  %s18 = inlined_call_operand.vmem [shape: f32[3,32], index: 18, kind: input, shape index: {}]
  %s19 = inlined_call_operand.hbm [shape: f32[2,8,32], index: 19, kind: output, shape index: {}]
  %s20 = sld [smem:[#allocation0]]
  $region121: #{tpu_custom_call.1} parent=0
    _
  %s22 = ssub.s32 1, %s20
  %s23 = scalar_select 0, %s22, %s20
  %25 = dma.hbm_to_smem %s0, 16, [#allocation3], [#allocation2]
  %26 = dma.done [#allocation2], 16
  %27 = sfence
  $region1: #{tpu_custom_call.1} parent=0
    #allocation4 [shape = 'u8[512]{0}', space=vmem, size = 0x400, scoped, tag = 'input window, operand 4, single buffered']
    #allocation5 [shape = 's32[2]{0}', space=sflag, size = 0x8, scoped, tag = 'scoped memory for tpu_custom_call.1']
    #allocation6 [shape = 's32[2]{0}', space=sflag, size = 0x8, scoped, tag = 'scoped memory for tpu_custom_call.1']
    #allocation7 [shape = 'u8[512]{0}', space=vmem, size = 0x400, scoped, tag = 'input window, operand 6, single buffered']
    #allocation8 [shape = 's32[1]{0}', space=sflag, size = 0x4, scoped, tag = 'scoped memory for tpu_custom_call.1']
    #allocation9 [shape = 'u8[512]{0}', space=vmem, size = 0x400, scoped, tag = 'input window, operand 8, single buffered']
    #allocation10 [shape = 'u8[512]{0}', space=vmem, size = 0x400, scoped, tag = 'input window, operand 10, single buffered']
    #allocation11 [shape = 's32[1]{0}', space=sflag, size = 0x4, scoped, tag = 'scoped memory for tpu_custom_call.1']
    #allocation12 [shape = 'u8[8192]{0}', space=vmem, size = 0x2000, scoped, tag = 'output window, operand 0']
    %28 = vsyncpa [#allocation5], 0
    %29 = vsyncpa [#allocation8], 0
    %30 = vsyncpa [#allocation11], 0
    %31 = vsyncpa [#allocation6], 0
    %s32 = scalar_lea.sflag [#allocation6], 1
    %33 = vsyncpa %s32, 0
    loop: start=0, step=1, limit=4
    $region2: #{tpu_custom_call.1} parent=1 // loop_pre_header
      _
    $region3: #{tpu_custom_call.1} parent=1 // loop_header
      %s35 = sphi 0, %s39
      %p36 = scmp.ge.s32.totalorder %s35, 4
      %s45 = sphi 0, %s47
      %s48 = sphi 0, %s45
      %s49 = sphi 0, %s48
      %s65 = sphi 0, %s49
      %s71 = sphi 0, %s73
      %s74 = sphi 0, %s71
      %s75 = sphi 0, %s74
      %s91 = sphi 0, %s75
      %s95 = sphi 0, %s95
      %s97 = sphi 0, %s95
      %s98 = sphi 0, %s97
      %s112 = sphi 0, %s98
      %s116 = sphi 0, %s116
      %s118 = sphi 0, %s116
      %s119 = sphi 0, %s118
      %s133 = sphi 0, %s119
      %s137 = sphi 0, %s137
      %s139 = sphi 0, %s137
      %s140 = sphi 0, %s139
      %s154 = sphi 0, %s140
      %s158 = sphi 0, %s158
      %s160 = sphi 0, %s158
      %s161 = sphi 0, %s160
      %s175 = sphi 0, %s161
      %s179 = sphi 0, %s179
      %s181 = sphi 0, %s179
      %s182 = sphi 0, %s181
      %s196 = sphi 0, %s182
      %s200 = sphi 0, %s200
      %s202 = sphi 0, %s200
      %s203 = sphi 0, %s202
      %s217 = sphi 0, %s203
      %s221 = sphi 0, %s221
      %s223 = sphi 0, %s221
      %s224 = sphi 0, %s223
      %s238 = sphi 0, %s224
      %s242 = sphi 0, %s242
      %s244 = sphi 0, %s242
      %s245 = sphi 0, %s244
      %s259 = sphi 0, %s245
      %s263 = sphi 0, %s263
      %s265 = sphi 0, %s263
      %s266 = sphi 0, %s265
      %s280 = sphi 0, %s266
      %s284 = sphi 0, %s284
      %s286 = sphi 0, %s284
      %s287 = sphi 0, %s286
      %s301 = sphi 0, %s287
      %s305 = sphi 0, %s305
      %s307 = sphi 0, %s305
      %s308 = sphi 0, %s307
      %s322 = sphi 0, %s308
      %s326 = sphi 0, %s326
      %s328 = sphi 0, %s326
      %s329 = sphi 0, %s328
      %s343 = sphi 0, %s329
      %s347 = sphi 0, %s347
      %s349 = sphi 0, %s347
      %s350 = sphi 0, %s349
      %s364 = sphi 0, %s350
      %s368 = sphi 0, %s368
      %s370 = sphi 0, %s368
      %s371 = sphi 0, %s370
      %s385 = sphi 0, %s371
      %s389 = sphi 0, %s389
      %s391 = sphi 0, %s389
      %s392 = sphi 0, %s391
      %s406 = sphi 0, %s392
      %s410 = sphi 0, %s410
      %s412 = sphi 0, %s410
      %s413 = sphi 0, %s412
      %s427 = sphi 0, %s413
      %s433 = sphi 0, %s435
      %s436 = sphi 0, %s433
      %s437 = sphi 0, %s436
      %s453 = sphi 0, %s437
    $region4: #{tpu_custom_call.1} parent=1 // loop_header_branch
      %38 = sbr.rel (%p36) target = $region8
    $region5: #{tpu_custom_call.1} parent=1 // loop_body
      %s40 = ssub.s32 %s35, 1
      %s41 = ssub.s32 %s35, 2
      %s42 = sadd.s32 %s35, 1
      %s43 = ssub.s32 %s35, %s42
      %p44 = scmp.eq.s32.totalorder %s43, 0
      %s46 = sadd.s32 %s45, 1
      %s47 = scalar_select %p44, %s45, %s46
      %p50 = pneg %p44
      %p51 = scmp.eq.s32.totalorder %s35, 1
      %p52 = por %p50, %p51
      %p53 = scmp.ne.s32.totalorder %s45, %s48
      %p54 = scmp.eq.s32.totalorder %s35, 0
      %p55 = por %p53, %p54
      %p56 = scmp.ne.s32.totalorder %s45, %s48
      %p57 = scmp.eq.s32.totalorder %s40, 1
      %p58 = por %p56, %p57
      %p59 = scmp.ne.s32.totalorder %s48, %s49
      %p60 = scmp.eq.s32.totalorder %s40, 0
      %p61 = por %p59, %p60
      %p62 = scmp.ne.s32.totalorder %s48, %s49
      %p63 = scmp.eq.s32.totalorder %s41, 1
      %p64 = por %p62, %p63
      %p66 = scmp.ne.s32.totalorder %s49, %s65
      %p67 = scmp.eq.s32.totalorder %s41, 0
      %p68 = por %p66, %p67
      %s69 = ssub.s32 %s35, %s42
      %p70 = scmp.eq.s32.totalorder %s69, 0
      %s72 = sadd.s32 %s71, 1
      %s73 = scalar_select %p70, %s71, %s72
      %p76 = pneg %p70
      %p77 = scmp.eq.s32.totalorder %s35, 1
      %p78 = por %p76, %p77
      %p79 = scmp.ne.s32.totalorder %s71, %s74
      %p80 = scmp.eq.s32.totalorder %s35, 0
      %p81 = por %p79, %p80
      %p82 = scmp.ne.s32.totalorder %s71, %s74
      %p83 = scmp.eq.s32.totalorder %s40, 1
      %p84 = por %p82, %p83
      %p85 = scmp.ne.s32.totalorder %s74, %s75
      %p86 = scmp.eq.s32.totalorder %s40, 0
      %p87 = por %p85, %p86
      %p88 = scmp.ne.s32.totalorder %s74, %s75
      %p89 = scmp.eq.s32.totalorder %s41, 1
      %p90 = por %p88, %p89
      %p92 = scmp.ne.s32.totalorder %s75, %s91
      %p93 = scmp.eq.s32.totalorder %s41, 0
      %p94 = por %p92, %p93
      %s96 = sadd.s32 %s95, 1
      %p99 = scmp.eq.s32.totalorder %s35, 1
      %p100 = scmp.ne.s32.totalorder %s95, %s97
      %p101 = scmp.eq.s32.totalorder %s35, 0
      %p102 = por %p100, %p101
      %p103 = scmp.ne.s32.totalorder %s95, %s97
      %p104 = scmp.eq.s32.totalorder %s40, 1
      %p105 = por %p103, %p104
      %p106 = scmp.ne.s32.totalorder %s97, %s98
      %p107 = scmp.eq.s32.totalorder %s40, 0
      %p108 = por %p106, %p107
      %p109 = scmp.ne.s32.totalorder %s97, %s98
      %p110 = scmp.eq.s32.totalorder %s41, 1
      %p111 = por %p109, %p110
      %p113 = scmp.ne.s32.totalorder %s98, %s112
      %p114 = scmp.eq.s32.totalorder %s41, 0
      %p115 = por %p113, %p114
      %s117 = sadd.s32 %s116, 1
      %p120 = scmp.eq.s32.totalorder %s35, 1
      %p121 = scmp.ne.s32.totalorder %s116, %s118
      %p122 = scmp.eq.s32.totalorder %s35, 0
      %p123 = por %p121, %p122
      %p124 = scmp.ne.s32.totalorder %s116, %s118
      %p125 = scmp.eq.s32.totalorder %s40, 1
      %p126 = por %p124, %p125
      %p127 = scmp.ne.s32.totalorder %s118, %s119
      %p128 = scmp.eq.s32.totalorder %s40, 0
      %p129 = por %p127, %p128
      %p130 = scmp.ne.s32.totalorder %s118, %s119
      %p131 = scmp.eq.s32.totalorder %s41, 1
      %p132 = por %p130, %p131
      %p134 = scmp.ne.s32.totalorder %s119, %s133
      %p135 = scmp.eq.s32.totalorder %s41, 0
      %p136 = por %p134, %p135
      %s138 = sadd.s32 %s137, 1
      %p141 = scmp.eq.s32.totalorder %s35, 1
      %p142 = scmp.ne.s32.totalorder %s137, %s139
      %p143 = scmp.eq.s32.totalorder %s35, 0
      %p144 = por %p142, %p143
      %p145 = scmp.ne.s32.totalorder %s137, %s139
      %p146 = scmp.eq.s32.totalorder %s40, 1
      %p147 = por %p145, %p146
      %p148 = scmp.ne.s32.totalorder %s139, %s140
      %p149 = scmp.eq.s32.totalorder %s40, 0
      %p150 = por %p148, %p149
      %p151 = scmp.ne.s32.totalorder %s139, %s140
      %p152 = scmp.eq.s32.totalorder %s41, 1
      %p153 = por %p151, %p152
      %p155 = scmp.ne.s32.totalorder %s140, %s154
      %p156 = scmp.eq.s32.totalorder %s41, 0
      %p157 = por %p155, %p156
      %s159 = sadd.s32 %s158, 1
      %p162 = scmp.eq.s32.totalorder %s35, 1
      %p163 = scmp.ne.s32.totalorder %s158, %s160
      %p164 = scmp.eq.s32.totalorder %s35, 0
      %p165 = por %p163, %p164
      %p166 = scmp.ne.s32.totalorder %s158, %s160
      %p167 = scmp.eq.s32.totalorder %s40, 1
      %p168 = por %p166, %p167
      %p169 = scmp.ne.s32.totalorder %s160, %s161
      %p170 = scmp.eq.s32.totalorder %s40, 0
      %p171 = por %p169, %p170
      %p172 = scmp.ne.s32.totalorder %s160, %s161
      %p173 = scmp.eq.s32.totalorder %s41, 1
      %p174 = por %p172, %p173
      %p176 = scmp.ne.s32.totalorder %s161, %s175
      %p177 = scmp.eq.s32.totalorder %s41, 0
      %p178 = por %p176, %p177
      %s180 = sadd.s32 %s179, 1
      %p183 = scmp.eq.s32.totalorder %s35, 1
      %p184 = scmp.ne.s32.totalorder %s179, %s181
      %p185 = scmp.eq.s32.totalorder %s35, 0
      %p186 = por %p184, %p185
      %p187 = scmp.ne.s32.totalorder %s179, %s181
      %p188 = scmp.eq.s32.totalorder %s40, 1
      %p189 = por %p187, %p188
      %p190 = scmp.ne.s32.totalorder %s181, %s182
      %p191 = scmp.eq.s32.totalorder %s40, 0
      %p192 = por %p190, %p191
      %p193 = scmp.ne.s32.totalorder %s181, %s182
      %p194 = scmp.eq.s32.totalorder %s41, 1
      %p195 = por %p193, %p194
      %p197 = scmp.ne.s32.totalorder %s182, %s196
      %p198 = scmp.eq.s32.totalorder %s41, 0
      %p199 = por %p197, %p198
      %s201 = sadd.s32 %s200, 1
      %p204 = scmp.eq.s32.totalorder %s35, 1
      %p205 = scmp.ne.s32.totalorder %s200, %s202
      %p206 = scmp.eq.s32.totalorder %s35, 0
      %p207 = por %p205, %p206
      %p208 = scmp.ne.s32.totalorder %s200, %s202
      %p209 = scmp.eq.s32.totalorder %s40, 1
      %p210 = por %p208, %p209
      %p211 = scmp.ne.s32.totalorder %s202, %s203
      %p212 = scmp.eq.s32.totalorder %s40, 0
      %p213 = por %p211, %p212
      %p214 = scmp.ne.s32.totalorder %s202, %s203
      %p215 = scmp.eq.s32.totalorder %s41, 1
      %p216 = por %p214, %p215
      %p218 = scmp.ne.s32.totalorder %s203, %s217
      %p219 = scmp.eq.s32.totalorder %s41, 0
      %p220 = por %p218, %p219
      %s222 = sadd.s32 %s221, 1
      %p225 = scmp.eq.s32.totalorder %s35, 1
      %p226 = scmp.ne.s32.totalorder %s221, %s223
      %p227 = scmp.eq.s32.totalorder %s35, 0
      %p228 = por %p226, %p227
      %p229 = scmp.ne.s32.totalorder %s221, %s223
      %p230 = scmp.eq.s32.totalorder %s40, 1
      %p231 = por %p229, %p230
      %p232 = scmp.ne.s32.totalorder %s223, %s224
      %p233 = scmp.eq.s32.totalorder %s40, 0
      %p234 = por %p232, %p233
      %p235 = scmp.ne.s32.totalorder %s223, %s224
      %p236 = scmp.eq.s32.totalorder %s41, 1
      %p237 = por %p235, %p236
      %p239 = scmp.ne.s32.totalorder %s224, %s238
      %p240 = scmp.eq.s32.totalorder %s41, 0
      %p241 = por %p239, %p240
      %s243 = sadd.s32 %s242, 1
      %p246 = scmp.eq.s32.totalorder %s35, 1
      %p247 = scmp.ne.s32.totalorder %s242, %s244
      %p248 = scmp.eq.s32.totalorder %s35, 0
      %p249 = por %p247, %p248
      %p250 = scmp.ne.s32.totalorder %s242, %s244
      %p251 = scmp.eq.s32.totalorder %s40, 1
      %p252 = por %p250, %p251
      %p253 = scmp.ne.s32.totalorder %s244, %s245
      %p254 = scmp.eq.s32.totalorder %s40, 0
      %p255 = por %p253, %p254
      %p256 = scmp.ne.s32.totalorder %s244, %s245
      %p257 = scmp.eq.s32.totalorder %s41, 1
      %p258 = por %p256, %p257
      %p260 = scmp.ne.s32.totalorder %s245, %s259
      %p261 = scmp.eq.s32.totalorder %s41, 0
      %p262 = por %p260, %p261
      %s264 = sadd.s32 %s263, 1
      %p267 = scmp.eq.s32.totalorder %s35, 1
      %p268 = scmp.ne.s32.totalorder %s263, %s265
      %p269 = scmp.eq.s32.totalorder %s35, 0
      %p270 = por %p268, %p269
      %p271 = scmp.ne.s32.totalorder %s263, %s265
      %p272 = scmp.eq.s32.totalorder %s40, 1
      %p273 = por %p271, %p272
      %p274 = scmp.ne.s32.totalorder %s265, %s266
      %p275 = scmp.eq.s32.totalorder %s40, 0
      %p276 = por %p274, %p275
      %p277 = scmp.ne.s32.totalorder %s265, %s266
      %p278 = scmp.eq.s32.totalorder %s41, 1
      %p279 = por %p277, %p278
      %p281 = scmp.ne.s32.totalorder %s266, %s280
      %p282 = scmp.eq.s32.totalorder %s41, 0
      %p283 = por %p281, %p282
      %s285 = sadd.s32 %s284, 1
      %p288 = scmp.eq.s32.totalorder %s35, 1
      %p289 = scmp.ne.s32.totalorder %s284, %s286
      %p290 = scmp.eq.s32.totalorder %s35, 0
      %p291 = por %p289, %p290
      %p292 = scmp.ne.s32.totalorder %s284, %s286
      %p293 = scmp.eq.s32.totalorder %s40, 1
      %p294 = por %p292, %p293
      %p295 = scmp.ne.s32.totalorder %s286, %s287
      %p296 = scmp.eq.s32.totalorder %s40, 0
      %p297 = por %p295, %p296
      %p298 = scmp.ne.s32.totalorder %s286, %s287
      %p299 = scmp.eq.s32.totalorder %s41, 1
      %p300 = por %p298, %p299
      %p302 = scmp.ne.s32.totalorder %s287, %s301
      %p303 = scmp.eq.s32.totalorder %s41, 0
      %p304 = por %p302, %p303
      %s306 = sadd.s32 %s305, 1
      %p309 = scmp.eq.s32.totalorder %s35, 1
      %p310 = scmp.ne.s32.totalorder %s305, %s307
      %p311 = scmp.eq.s32.totalorder %s35, 0
      %p312 = por %p310, %p311
      %p313 = scmp.ne.s32.totalorder %s305, %s307
      %p314 = scmp.eq.s32.totalorder %s40, 1
      %p315 = por %p313, %p314
      %p316 = scmp.ne.s32.totalorder %s307, %s308
      %p317 = scmp.eq.s32.totalorder %s40, 0
      %p318 = por %p316, %p317
      %p319 = scmp.ne.s32.totalorder %s307, %s308
      %p320 = scmp.eq.s32.totalorder %s41, 1
      %p321 = por %p319, %p320
      %p323 = scmp.ne.s32.totalorder %s308, %s322
      %p324 = scmp.eq.s32.totalorder %s41, 0
      %p325 = por %p323, %p324
      %s327 = sadd.s32 %s326, 1
      %p330 = scmp.eq.s32.totalorder %s35, 1
      %p331 = scmp.ne.s32.totalorder %s326, %s328
      %p332 = scmp.eq.s32.totalorder %s35, 0
      %p333 = por %p331, %p332
      %p334 = scmp.ne.s32.totalorder %s326, %s328
      %p335 = scmp.eq.s32.totalorder %s40, 1
      %p336 = por %p334, %p335
      %p337 = scmp.ne.s32.totalorder %s328, %s329
      %p338 = scmp.eq.s32.totalorder %s40, 0
      %p339 = por %p337, %p338
      %p340 = scmp.ne.s32.totalorder %s328, %s329
      %p341 = scmp.eq.s32.totalorder %s41, 1
      %p342 = por %p340, %p341
      %p344 = scmp.ne.s32.totalorder %s329, %s343
      %p345 = scmp.eq.s32.totalorder %s41, 0
      %p346 = por %p344, %p345
      %s348 = sadd.s32 %s347, 1
      %p351 = scmp.eq.s32.totalorder %s35, 1
      %p352 = scmp.ne.s32.totalorder %s347, %s349
      %p353 = scmp.eq.s32.totalorder %s35, 0
      %p354 = por %p352, %p353
      %p355 = scmp.ne.s32.totalorder %s347, %s349
      %p356 = scmp.eq.s32.totalorder %s40, 1
      %p357 = por %p355, %p356
      %p358 = scmp.ne.s32.totalorder %s349, %s350
      %p359 = scmp.eq.s32.totalorder %s40, 0
      %p360 = por %p358, %p359
      %p361 = scmp.ne.s32.totalorder %s349, %s350
      %p362 = scmp.eq.s32.totalorder %s41, 1
      %p363 = por %p361, %p362
      %p365 = scmp.ne.s32.totalorder %s350, %s364
      %p366 = scmp.eq.s32.totalorder %s41, 0
      %p367 = por %p365, %p366
      %s369 = sadd.s32 %s368, 1
      %p372 = scmp.eq.s32.totalorder %s35, 1
      %p373 = scmp.ne.s32.totalorder %s368, %s370
      %p374 = scmp.eq.s32.totalorder %s35, 0
      %p375 = por %p373, %p374
      %p376 = scmp.ne.s32.totalorder %s368, %s370
      %p377 = scmp.eq.s32.totalorder %s40, 1
      %p378 = por %p376, %p377
      %p379 = scmp.ne.s32.totalorder %s370, %s371
      %p380 = scmp.eq.s32.totalorder %s40, 0
      %p381 = por %p379, %p380
      %p382 = scmp.ne.s32.totalorder %s370, %s371
      %p383 = scmp.eq.s32.totalorder %s41, 1
      %p384 = por %p382, %p383
      %p386 = scmp.ne.s32.totalorder %s371, %s385
      %p387 = scmp.eq.s32.totalorder %s41, 0
      %p388 = por %p386, %p387
      %s390 = sadd.s32 %s389, 1
      %p393 = scmp.eq.s32.totalorder %s35, 1
      %p394 = scmp.ne.s32.totalorder %s389, %s391
      %p395 = scmp.eq.s32.totalorder %s35, 0
      %p396 = por %p394, %p395
      %p397 = scmp.ne.s32.totalorder %s389, %s391
      %p398 = scmp.eq.s32.totalorder %s40, 1
      %p399 = por %p397, %p398
      %p400 = scmp.ne.s32.totalorder %s391, %s392
      %p401 = scmp.eq.s32.totalorder %s40, 0
      %p402 = por %p400, %p401
      %p403 = scmp.ne.s32.totalorder %s391, %s392
      %p404 = scmp.eq.s32.totalorder %s41, 1
      %p405 = por %p403, %p404
      %p407 = scmp.ne.s32.totalorder %s392, %s406
      %p408 = scmp.eq.s32.totalorder %s41, 0
      %p409 = por %p407, %p408
      %s411 = sadd.s32 %s410, 1
      %p414 = scmp.eq.s32.totalorder %s35, 1
      %p415 = scmp.ne.s32.totalorder %s410, %s412
      %p416 = scmp.eq.s32.totalorder %s35, 0
      %p417 = por %p415, %p416
      %p418 = scmp.ne.s32.totalorder %s410, %s412
      %p419 = scmp.eq.s32.totalorder %s40, 1
      %p420 = por %p418, %p419
      %p421 = scmp.ne.s32.totalorder %s412, %s413
      %p422 = scmp.eq.s32.totalorder %s40, 0
      %p423 = por %p421, %p422
      %p424 = scmp.ne.s32.totalorder %s412, %s413
      %p425 = scmp.eq.s32.totalorder %s41, 1
      %p426 = por %p424, %p425
      %p428 = scmp.ne.s32.totalorder %s413, %s427
      %p429 = scmp.eq.s32.totalorder %s41, 0
      %p430 = por %p428, %p429
      %s431 = ssub.s32 %s35, %s42
      %p432 = scmp.eq.s32.totalorder %s431, 0
      %s434 = sadd.s32 %s433, 1
      %s435 = scalar_select %p432, %s433, %s434
      %p438 = pneg %p432
      %p439 = scmp.eq.s32.totalorder %s35, 1
      %p440 = por %p438, %p439
      %p441 = scmp.ne.s32.totalorder %s433, %s436
      %p442 = scmp.eq.s32.totalorder %s35, 0
      %p443 = por %p441, %p442
      %p444 = scmp.ne.s32.totalorder %s433, %s436
      %p445 = scmp.eq.s32.totalorder %s40, 1
      %p446 = por %p444, %p445
      %p447 = scmp.ne.s32.totalorder %s436, %s437
      %p448 = scmp.eq.s32.totalorder %s40, 0
      %p449 = por %p447, %p448
      %p450 = scmp.ne.s32.totalorder %s436, %s437
      %p451 = scmp.eq.s32.totalorder %s41, 1
      %p452 = por %p450, %p451
      %p454 = scmp.ne.s32.totalorder %s437, %s453
      %p455 = scmp.eq.s32.totalorder %s41, 0
      %p456 = por %p454, %p455
      %p457 = scmp.le.s32.totalorder 1, %s35
      %p458 = scmp.lt.s32.totalorder %s35, 3
      %p459 = pnand %p457, %p458
      %p460 = pneg %p459
      // Predicated region
      $region9: #{tpu_custom_call.1} parent=5 // pred_check
        _
      $region10: #{tpu_custom_call.1} parent=5 // pred_check_branch
        %462 = sbr.rel (%p459) target = $region12
      $region11: #{tpu_custom_call.1} parent=5 // pred_region
        %s463 = ssub.s32 %s35, 1
        // Predicated region
        $region13: #{tpu_custom_call.1} parent=11 // pred_check
          %p464 = pneg %p108
        $region14: #{tpu_custom_call.1} parent=11 // pred_check_branch
          %466 = sbr.rel (%p464) target = $region16
        $region15: #{tpu_custom_call.1} parent=11 // pred_region
          _
        $region16: #{tpu_custom_call.1} parent=11 // pred_fallthru
          _
        // Predicated region
        $region17: #{tpu_custom_call.1} parent=11 // pred_check
          %p467 = pneg %p129
        $region18: #{tpu_custom_call.1} parent=11 // pred_check_branch
          %469 = sbr.rel (%p467) target = $region20
        $region19: #{tpu_custom_call.1} parent=11 // pred_region
          %s471 = ssub.s32 16, 16
          %472 = vsyncadd [#allocation5], %s471
          %s474 = sshll.u32 [#allocation4], 4
          %s475 = int_to_ptr.vmem [resolvable:$true] %s474
          %477 = dma.hbm_to_vmem [thread:$0]  %s4, 16, %s475, [#allocation5]
        $region20: #{tpu_custom_call.1} parent=11 // pred_fallthru
          _
        // Predicated region
        $region21: #{tpu_custom_call.1} parent=11 // pred_check
          %p478 = pneg %p150
        $region22: #{tpu_custom_call.1} parent=11 // pred_check_branch
          %480 = sbr.rel (%p478) target = $region24
        $region23: #{tpu_custom_call.1} parent=11 // pred_region
          _
        $region24: #{tpu_custom_call.1} parent=11 // pred_fallthru
          _
        // Predicated region
        $region25: #{tpu_custom_call.1} parent=11 // pred_check
          %p481 = pneg %p171
        $region26: #{tpu_custom_call.1} parent=11 // pred_check_branch
          %483 = sbr.rel (%p481) target = $region28
        $region27: #{tpu_custom_call.1} parent=11 // pred_region
          %s485 = ssub.s32 16, 16
          %486 = vsyncadd [#allocation8], %s485
          %s488 = sshll.u32 [#allocation7], 4
          %s489 = int_to_ptr.vmem [resolvable:$true] %s488
          %491 = dma.hbm_to_vmem [thread:$0]  %s6, 16, %s489, [#allocation8]
        $region28: #{tpu_custom_call.1} parent=11 // pred_fallthru
          _
        // Predicated region
        $region29: #{tpu_custom_call.1} parent=11 // pred_check
          %p492 = pneg %p192
        $region30: #{tpu_custom_call.1} parent=11 // pred_check_branch
          %494 = sbr.rel (%p492) target = $region32
        $region31: #{tpu_custom_call.1} parent=11 // pred_region
          _
        $region32: #{tpu_custom_call.1} parent=11 // pred_fallthru
          _
        // Predicated region
        $region33: #{tpu_custom_call.1} parent=11 // pred_check
          %p495 = pneg %p213
        $region34: #{tpu_custom_call.1} parent=11 // pred_check_branch
          %497 = sbr.rel (%p495) target = $region36
        $region35: #{tpu_custom_call.1} parent=11 // pred_region
          %s499 = ssub.s32 16, 16
          %500 = vsyncadd [#allocation8], %s499
          %s502 = sshll.u32 [#allocation9], 4
          %s503 = int_to_ptr.vmem [resolvable:$true] %s502
          %505 = dma.hbm_to_vmem [thread:$0]  %s8, 16, %s503, [#allocation8]
        $region36: #{tpu_custom_call.1} parent=11 // pred_fallthru
          _
        // Predicated region
        $region37: #{tpu_custom_call.1} parent=11 // pred_check
          %p506 = pneg %p234
        $region38: #{tpu_custom_call.1} parent=11 // pred_check_branch
          %508 = sbr.rel (%p506) target = $region40
        $region39: #{tpu_custom_call.1} parent=11 // pred_region
          _
        $region40: #{tpu_custom_call.1} parent=11 // pred_fallthru
          _
        // Predicated region
        $region41: #{tpu_custom_call.1} parent=11 // pred_check
          %p509 = pneg %p255
        $region42: #{tpu_custom_call.1} parent=11 // pred_check_branch
          %511 = sbr.rel (%p509) target = $region44
        $region43: #{tpu_custom_call.1} parent=11 // pred_region
          %s513 = ssub.s32 16, 16
          %514 = vsyncadd [#allocation11], %s513
          %s516 = sshll.u32 [#allocation10], 4
          %s517 = int_to_ptr.vmem [resolvable:$true] %s516
          %519 = dma.hbm_to_vmem [thread:$0]  %s10, 16, %s517, [#allocation11]
        $region44: #{tpu_custom_call.1} parent=11 // pred_fallthru
          _
        // Predicated region
        $region45: #{tpu_custom_call.1} parent=11 // pred_check
          %p520 = pneg %p276
        $region46: #{tpu_custom_call.1} parent=11 // pred_check_branch
          %522 = sbr.rel (%p520) target = $region48
        $region47: #{tpu_custom_call.1} parent=11 // pred_region
          _
        $region48: #{tpu_custom_call.1} parent=11 // pred_fallthru
          _
        // Predicated region
        $region49: #{tpu_custom_call.1} parent=11 // pred_check
          %p523 = pneg %p297
        $region50: #{tpu_custom_call.1} parent=11 // pred_check_branch
          %525 = sbr.rel (%p523) target = $region52
        $region51: #{tpu_custom_call.1} parent=11 // pred_region
          _
        $region52: #{tpu_custom_call.1} parent=11 // pred_fallthru
          _
        // Predicated region
        $region53: #{tpu_custom_call.1} parent=11 // pred_check
          %p526 = pneg %p318
        $region54: #{tpu_custom_call.1} parent=11 // pred_check_branch
          %528 = sbr.rel (%p526) target = $region56
        $region55: #{tpu_custom_call.1} parent=11 // pred_region
          _
        $region56: #{tpu_custom_call.1} parent=11 // pred_fallthru
          _
        // Predicated region
        $region57: #{tpu_custom_call.1} parent=11 // pred_check
          %p529 = pneg %p339
        $region58: #{tpu_custom_call.1} parent=11 // pred_check_branch
          %531 = sbr.rel (%p529) target = $region60
        $region59: #{tpu_custom_call.1} parent=11 // pred_region
          _
        $region60: #{tpu_custom_call.1} parent=11 // pred_fallthru
          _
        // Predicated region
        $region61: #{tpu_custom_call.1} parent=11 // pred_check
          %p532 = pneg %p360
        $region62: #{tpu_custom_call.1} parent=11 // pred_check_branch
          %534 = sbr.rel (%p532) target = $region64
        $region63: #{tpu_custom_call.1} parent=11 // pred_region
          _
        $region64: #{tpu_custom_call.1} parent=11 // pred_fallthru
          _
        // Predicated region
        $region65: #{tpu_custom_call.1} parent=11 // pred_check
          %p535 = pneg %p381
        $region66: #{tpu_custom_call.1} parent=11 // pred_check_branch
          %537 = sbr.rel (%p535) target = $region68
        $region67: #{tpu_custom_call.1} parent=11 // pred_region
          _
        $region68: #{tpu_custom_call.1} parent=11 // pred_fallthru
          _
        // Predicated region
        $region69: #{tpu_custom_call.1} parent=11 // pred_check
          %p538 = pneg %p402
        $region70: #{tpu_custom_call.1} parent=11 // pred_check_branch
          %540 = sbr.rel (%p538) target = $region72
        $region71: #{tpu_custom_call.1} parent=11 // pred_region
          _
        $region72: #{tpu_custom_call.1} parent=11 // pred_fallthru
          _
        // Predicated region
        $region73: #{tpu_custom_call.1} parent=11 // pred_check
          %p541 = pneg %p423
        $region74: #{tpu_custom_call.1} parent=11 // pred_check_branch
          %543 = sbr.rel (%p541) target = $region76
        $region75: #{tpu_custom_call.1} parent=11 // pred_region
          _
        $region76: #{tpu_custom_call.1} parent=11 // pred_fallthru
          _
      $region12: #{tpu_custom_call.1} parent=5 // pred_fallthru
        _
      %p544 = scmp.lt.s32.totalorder %s35, 2
      // Predicated region
      $region77: #{tpu_custom_call.1} parent=5 // pred_check
        %p545 = pneg %p544
      $region78: #{tpu_custom_call.1} parent=5 // pred_check_branch
        %547 = sbr.rel (%p545) target = $region80
      $region79: #{tpu_custom_call.1} parent=5 // pred_region
        // Predicated region
        $region81: #{tpu_custom_call.1} parent=79 // pred_check
          %p548 = pneg %p55
        $region82: #{tpu_custom_call.1} parent=79 // pred_check_branch
          %550 = sbr.rel (%p548) target = $region84
        $region83: #{tpu_custom_call.1} parent=79 // pred_region
          %p551 = scmp.lt.s32.totalorder %s35, 1
          %s552 = scalar_select %p551, %s35, 1
          %s553 = smul.addr %s552, 8
          %s554 = scalar_lea.vmem %s1, %s553
        $region84: #{tpu_custom_call.1} parent=79 // pred_fallthru
          _
        // Predicated region
        $region85: #{tpu_custom_call.1} parent=79 // pred_check
          %p555 = pneg %p81
        $region86: #{tpu_custom_call.1} parent=79 // pred_check_branch
          %557 = sbr.rel (%p555) target = $region88
        $region87: #{tpu_custom_call.1} parent=79 // pred_region
          %p558 = scmp.lt.s32.totalorder %s35, 1
          %s559 = scalar_select %p558, %s35, 1
          %s560 = smul.addr %s559, 2
          %s561 = smul.addr %s560, 8
          %s562 = scalar_lea.vmem %s2, %s561
        $region88: #{tpu_custom_call.1} parent=79 // pred_fallthru
          _
      $region80: #{tpu_custom_call.1} parent=5 // pred_fallthru
        _
      %p563 = scmp.le.s32.totalorder 1, %s35
      %p564 = scmp.lt.s32.totalorder %s35, 3
      %p565 = pnand %p563, %p564
      %p566 = pneg %p565
      // Predicated region
      $region89: #{tpu_custom_call.1} parent=5 // pred_check
        _
      $region90: #{tpu_custom_call.1} parent=5 // pred_check_branch
        %568 = sbr.rel (%p565) target = $region92
      $region91: #{tpu_custom_call.1} parent=5 // pred_region
        %s569 = ssub.s32 %s35, 1
        // Predicated region
        $region93: #{tpu_custom_call.1} parent=91 // pred_check
          %p570 = pneg %p129
        $region94: #{tpu_custom_call.1} parent=91 // pred_check_branch
          %572 = sbr.rel (%p570) target = $region96
        $region95: #{tpu_custom_call.1} parent=91 // pred_region
          %573 = dma.done [#allocation5], 16
        $region96: #{tpu_custom_call.1} parent=91 // pred_fallthru
          _
        // Predicated region
        $region97: #{tpu_custom_call.1} parent=91 // pred_check
          %p574 = pneg %p171
        $region98: #{tpu_custom_call.1} parent=91 // pred_check_branch
          %576 = sbr.rel (%p574) target = $region100
        $region99: #{tpu_custom_call.1} parent=91 // pred_region
          %577 = dma.done [#allocation8], 16
        $region100: #{tpu_custom_call.1} parent=91 // pred_fallthru
          _
        // Predicated region
        $region101: #{tpu_custom_call.1} parent=91 // pred_check
          %p578 = pneg %p213
        $region102: #{tpu_custom_call.1} parent=91 // pred_check_branch
          %580 = sbr.rel (%p578) target = $region104
        $region103: #{tpu_custom_call.1} parent=91 // pred_region
          %581 = dma.done [#allocation8], 16
        $region104: #{tpu_custom_call.1} parent=91 // pred_fallthru
          _
        // Predicated region
        $region105: #{tpu_custom_call.1} parent=91 // pred_check
          %p582 = pneg %p255
        $region106: #{tpu_custom_call.1} parent=91 // pred_check_branch
          %584 = sbr.rel (%p582) target = $region108
        $region107: #{tpu_custom_call.1} parent=91 // pred_region
          %585 = dma.done [#allocation11], 16
        $region108: #{tpu_custom_call.1} parent=91 // pred_fallthru
          _
        %p586 = scmp.lt.s32.totalorder %s40, 1
        %s587 = scalar_select %p586, %s40, 1
        %s588 = smul.addr %s587, 8
        %s589 = scalar_lea.vmem %s1, %s588
        %p590 = pneg %p61
        %p591 = pneg %p58
        %p592 = scmp.lt.s32.totalorder %s40, 1
        %s593 = scalar_select %p592, %s40, 1
        %s594 = smul.addr %s593, 2
        %s595 = smul.addr %s594, 8
        %s596 = scalar_lea.vmem %s2, %s595
        %p597 = pneg %p87
        %p598 = pneg %p84
        %p599 = pneg %p108
        %p600 = pneg %p105
        %p601 = pneg %p129
        %p602 = pneg %p126
        %p603 = pneg %p150
        %p604 = pneg %p147
        %p605 = pneg %p171
        %p606 = pneg %p168
        %p607 = pneg %p192
        %p608 = pneg %p189
        %p609 = pneg %p213
        %p610 = pneg %p210
        %p611 = pneg %p234
        %p612 = pneg %p231
        %p613 = pneg %p255
        %p614 = pneg %p252
        %p615 = pneg %p276
        %p616 = pneg %p273
        %p617 = pneg %p297
        %p618 = pneg %p294
        %p619 = pneg %p318
        %p620 = pneg %p315
        %p621 = pneg %p339
        %p622 = pneg %p336
        %p623 = pneg %p360
        %p624 = pneg %p357
        %p625 = pneg %p381
        %p626 = pneg %p378
        %p627 = pneg %p402
        %p628 = pneg %p399
        %p629 = pneg %p423
        %p630 = pneg %p420
        %p631 = pneg %p449
        %p632 = pneg %p446
        %s633 = sand.u32 %s436, 1
        %s634 = scalar_lea.sflag [#allocation6], %s633
        %s635 = sand.u32 %s436, 1
        %s636 = smul.addr %s635, 8
        %s637 = scalar_lea.vmem [#allocation12], %s636
        %p638 = scmp.lt.s32.totalorder %s40, 1
        %s639 = scalar_select %p638, %s40, 1
        %s640 = smul.addr %s639, 8
        %s641 = scalar_lea.vmem %s1, %s640
        %p642 = scmp.lt.s32.totalorder %s40, 1
        %s643 = scalar_select %p642, %s40, 1
        %s644 = smul.addr %s643, 2
        %s645 = smul.addr %s644, 8
        %s646 = scalar_lea.vmem %s2, %s645
        %v648 = vld [vmem:[%s641] sm:$0xff]
        %v649 = vld [vmem:[%s646] sm:$0xff]
        %v650 = vld [vmem:[%s646 + $0x8] sm:$0x3]
        %v651 = vlaneseq
        %v652 = vshrl.u32 %v651, 7
        %v653 = vlaneseq
        %v654 = vand.u32 %v653, 127
        %vm655 = vcmp.ge.s32.totalorder %v652, %v654
        %v656 = vsel %vm655, 0.0, -1e+09
        %s657 = sld [smem:[#allocation3 + %s40]]
        %v658 = vstv %s657
        %vm659 = vcmp.lt.s32.totalorder %v654, %v658
        %v660 = vsel %vm659, 0.0, -1e+09
        %v661 = vld [vmem:[%s17] sm:$0x1]
        %v662 = vld [vmem:[%s18] sm:$0x1]
        %vm663 = vcmask 261120
        %v664 = vsel %vm663, %v648, 0.0
        %665 = vadd.xlane.f32.xlu0 %v664
        %v666 = vpop.xlane.xlu0 %665
        %v667 = vrcp.pop 32.0
        %v668 = vmul.f32 %v666, %v667
        %v669 = vsub.f32 %v648, %v668
        %v670 = vmul.f32 %v669, %v669
        %v671 = vsel %vm663, %v670, 0.0
        %672 = vadd.xlane.f32.xlu0 %v671
        %v673 = vpop.xlane.xlu0 %672
        %v674 = vmul.f32 %v673, 0.032258064
        %v675 = vrsqrt.pop %v674
        %v676 = vmul.f32 %v674, %v675
        %vm677 = vcmp.eq.f32.partialorder %v674, inf
        %v678 = vsel %vm677, %v674, %v676
        %vm679 = vcmp.eq.f32.partialorder %v674, 0.0
        %v680 = vand.u32 %v674, 2147483648
        %v681 = vsel %vm679, %v680, %v678
        %v682 = vadd.f32 %v681, 1e-06
        %v683 = vrcp.pop %v682
        %v684 = vmul.f32 1.0, %v683
        %v685 = vmul.f32 %v669, %v684
        %v686 = vlaneseq
        %v687 = vshrl.u32 %v686, 7
        %v688 = vsub.s32 0, %v687
        %v689 = vrot.slane %v661, %v688
        %v690 = vmul.f32 %v689, %v685
        %v691 = vlaneseq
        %v692 = vshrl.u32 %v691, 7
        %v693 = vsub.s32 0, %v692
        %v694 = vrot.slane %v662, %v693
        %v695 = vadd.f32 %v690, %v694
        %v696 = vpack.c.bf16 %v695, %v695
        %v697 = vld [vmem:[%s3] sm:$0xf]
        %v698 = vld [vmem:[%s3 + $0x4] sm:$0xf]
        %v699 = vld [vmem:[%s3 + $0x8] sm:$0xf]
        %v700 = vld [vmem:[%s3 + $0xc] sm:$0xf]
        %v701 = vld [vmem:[#allocation4] sm:$0x1]
        %v703 = vlaneseq
        %v704 = vshrl.u32 %v703, 7
        %v705 = vsub.s32 0, %v704
        %v706 = vrot.slane %v701, %v705
        %v712 = vunpack.c.l.b16 %v697
        %v713 = vunpack.c.l.b16 %v698
        %v714 = vunpack.c.l.b16 %v699
        %v715 = vunpack.c.l.b16 %v700
        %v716 = vpack.c.b16 %v713, %v712
        %v717 = vpack.c.b16 %v715, %v714
        %v721 = vsel %vm663, %v696, 0
        %723 = vmatprep.subr.bf16.mxu0 0
        %724 = vmatpush1.bf16.msra.mxu0 0
        %725 = vmatprep.subr.bf16.mxu0 0
        %726 = vmatpush1.bf16.msra.mxu0 0
        %727 = vmatprep.subr.bf16.mxu0 0
        %728 = vmatpush1.bf16.msra.mxu0 0
        %729 = vmatprep.subr.bf16.mxu0 0
        %730 = vmatpush1.bf16.msra.mxu0 0
        %731 = vmatprep.subr.bf16.mxu0 0
        %732 = vmatpush1.bf16.msra.mxu0 0
        %733 = vmatprep.subr.bf16.mxu0 0
        %734 = vmatpush1.bf16.msra.mxu0 0
        %735 = vmatprep.subr.bf16.mxu0 0
        %736 = vmatpush1.bf16.msra.mxu0 %v717
        %737 = vmatprep.subr.bf16.mxu0 0
        %738 = vmatpush1.bf16.msra.mxu0 %v716
        %739 = vmatprep.subr.bf16.mxu0 0
        %740 = vmatpush2.bf16.msra.mxu0 0
        %741 = vmatprep.subr.bf16.mxu0 0
        %742 = vmatpush2.bf16.msra.mxu0 0
        %743 = vmatprep.subr.bf16.mxu0 0
        %744 = vmatpush2.bf16.msra.mxu0 0
        %745 = vmatprep.subr.bf16.mxu0 0
        %746 = vmatpush2.bf16.msra.mxu0 0
        %747 = vmatprep.subr.bf16.mxu0 0
        %748 = vmatpush2.bf16.msra.mxu0 0
        %749 = vmatprep.subr.bf16.mxu0 0
        %750 = vmatpush2.bf16.msra.mxu0 0
        %751 = vmatprep.subr.bf16.mxu0 0
        %752 = vmatpush2.bf16.msra.mxu0 0
        %753 = vmatprep.subr.bf16.mxu0 0
        %754 = vmatpush2.bf16.msra.mxu0 0
        %755 = vmatprep.mubr.bf16.mxu0 0
        %756 = vmatmul.mubr.bf16.gmra.mxu0 %v721
        %v757 = vpop.f32.mrf.mxu0
        %v758 = vadd.f32 %v706, %v757
        %v759 = vpop.f32.mrf.mxu0
        %v760 = vpop.f32.mrf.mxu0
        %v761 = vpop.f32.mrf.mxu0
        %762 = vdwg.mxu0
        %v763 = vld [vmem:[%s5] sm:$0xf]
        %v764 = vld [vmem:[%s5 + $0x4] sm:$0xf]
        %v765 = vld [vmem:[%s5 + $0x8] sm:$0xf]
        %v766 = vld [vmem:[%s5 + $0xc] sm:$0xf]
        %v767 = vld [vmem:[#allocation7] sm:$0x1]
        %769 = vrot.lane.b32.xlu0 %v758, 120
        %v770 = vpop.permute.xlu0 %769
        %772 = vrot.lane.b32.xlu0 %v758, 112
        %v773 = vpop.permute.xlu0 %772
        %775 = vrot.lane.b32.xlu0 %v758, 104
        %v776 = vpop.permute.xlu0 %775
        %v778 = vpack.c.bf16 %v758, %v758
        %v779 = vpack.c.bf16 %v770, %v770
        %v780 = vpack.c.bf16 %v773, %v773
        %v781 = vpack.c.bf16 %v776, %v776
        %783 = vrot.lane.b32.xlu0 %v778, 96
        %v784 = vpop.permute.xlu0 %783
        %vm785 = vcmask 64512
        %v787 = vsel %vm785, %v778, 0
        %v790 = vsel %vm785, %v784, 0
        %792 = vmatprep.subr.bf16.mxu0 0
        %793 = vmatpush1.bf16.xpose.msra.mxu0 0
        %794 = vmatprep.subr.bf16.mxu0 0
        %795 = vmatpush1.bf16.xpose.msra.mxu0 0
        %796 = vmatprep.subr.bf16.mxu0 0
        %797 = vmatpush1.bf16.xpose.msra.mxu0 0
        %798 = vmatprep.subr.bf16.mxu0 0
        %799 = vmatpush1.bf16.xpose.msra.mxu0 0
        %800 = vmatprep.subr.bf16.mxu0 0
        %801 = vmatpush1.bf16.xpose.msra.mxu0 0
        %802 = vmatprep.subr.bf16.mxu0 0
        %803 = vmatpush1.bf16.xpose.msra.mxu0 0
        %804 = vmatprep.subr.bf16.mxu0 0
        %805 = vmatpush1.bf16.xpose.msra.mxu0 0
        %806 = vmatprep.subr.bf16.mxu0 0
        %807 = vmatpush1.bf16.xpose.msra.mxu0 %v790
        %808 = vmatprep.subr.bf16.mxu0 0
        %809 = vmatpush2.bf16.xpose.msra.mxu0 0
        %810 = vmatprep.subr.bf16.mxu0 0
        %811 = vmatpush2.bf16.xpose.msra.mxu0 0
        %812 = vmatprep.subr.bf16.mxu0 0
        %813 = vmatpush2.bf16.xpose.msra.mxu0 0
        %814 = vmatprep.subr.bf16.mxu0 0
        %815 = vmatpush2.bf16.xpose.msra.mxu0 0
        %816 = vmatprep.subr.bf16.mxu0 0
        %817 = vmatpush2.bf16.xpose.msra.mxu0 0
        %818 = vmatprep.subr.bf16.mxu0 0
        %819 = vmatpush2.bf16.xpose.msra.mxu0 0
        %820 = vmatprep.subr.bf16.mxu0 0
        %821 = vmatpush2.bf16.xpose.msra.mxu0 0
        %822 = vmatprep.subr.bf16.mxu0 0
        %823 = vmatpush2.bf16.xpose.msra.mxu0 0
        %824 = vmatprep.mubr.bf16.mxu0 0
        %825 = vmatmul.mubr.bf16.gmra.mxu0 %v787
        %v826 = vpop.f32.mrf.mxu0
        %v827 = vadd.f32 %v656, %v826
        %v828 = vpop.f32.mrf.mxu0
        %v829 = vpop.f32.mrf.mxu0
        %v830 = vpop.f32.mrf.mxu0
        %831 = vdwg.mxu0
        %833 = vrot.lane.b32.xlu0 %v779, 96
        %v834 = vpop.permute.xlu0 %833
        %v836 = vsel %vm785, %v779, 0
        %v839 = vsel %vm785, %v834, 0
        %841 = vmatprep.subr.bf16.mxu0 0
        %842 = vmatpush1.bf16.xpose.msra.mxu0 0
        %843 = vmatprep.subr.bf16.mxu0 0
        %844 = vmatpush1.bf16.xpose.msra.mxu0 0
        %845 = vmatprep.subr.bf16.mxu0 0
        %846 = vmatpush1.bf16.xpose.msra.mxu0 0
        %847 = vmatprep.subr.bf16.mxu0 0
        %848 = vmatpush1.bf16.xpose.msra.mxu0 0
        %849 = vmatprep.subr.bf16.mxu0 0
        %850 = vmatpush1.bf16.xpose.msra.mxu0 0
        %851 = vmatprep.subr.bf16.mxu0 0
        %852 = vmatpush1.bf16.xpose.msra.mxu0 0
        %853 = vmatprep.subr.bf16.mxu0 0
        %854 = vmatpush1.bf16.xpose.msra.mxu0 0
        %855 = vmatprep.subr.bf16.mxu0 0
        %856 = vmatpush1.bf16.xpose.msra.mxu0 %v839
        %857 = vmatprep.subr.bf16.mxu0 0
        %858 = vmatpush2.bf16.xpose.msra.mxu0 0
        %859 = vmatprep.subr.bf16.mxu0 0
        %860 = vmatpush2.bf16.xpose.msra.mxu0 0
        %861 = vmatprep.subr.bf16.mxu0 0
        %862 = vmatpush2.bf16.xpose.msra.mxu0 0
        %863 = vmatprep.subr.bf16.mxu0 0
        %864 = vmatpush2.bf16.xpose.msra.mxu0 0
        %865 = vmatprep.subr.bf16.mxu0 0
        %866 = vmatpush2.bf16.xpose.msra.mxu0 0
        %867 = vmatprep.subr.bf16.mxu0 0
        %868 = vmatpush2.bf16.xpose.msra.mxu0 0
        %869 = vmatprep.subr.bf16.mxu0 0
        %870 = vmatpush2.bf16.xpose.msra.mxu0 0
        %871 = vmatprep.subr.bf16.mxu0 0
        %872 = vmatpush2.bf16.xpose.msra.mxu0 0
        %873 = vmatprep.mubr.bf16.mxu0 0
        %874 = vmatmul.mubr.bf16.gmra.mxu0 %v836
        %v875 = vpop.f32.mrf.mxu0
        %v876 = vadd.f32 %v656, %v875
        %v877 = vpop.f32.mrf.mxu0
        %v878 = vpop.f32.mrf.mxu0
        %v879 = vpop.f32.mrf.mxu0
        %880 = vdwg.mxu0
        %882 = vrot.lane.b32.xlu0 %v780, 96
        %v883 = vpop.permute.xlu0 %882
        %v885 = vsel %vm785, %v780, 0
        %v888 = vsel %vm785, %v883, 0
        %890 = vmatprep.subr.bf16.mxu0 0
        %891 = vmatpush1.bf16.xpose.msra.mxu0 0
        %892 = vmatprep.subr.bf16.mxu0 0
        %893 = vmatpush1.bf16.xpose.msra.mxu0 0
        %894 = vmatprep.subr.bf16.mxu0 0
        %895 = vmatpush1.bf16.xpose.msra.mxu0 0
        %896 = vmatprep.subr.bf16.mxu0 0
        %897 = vmatpush1.bf16.xpose.msra.mxu0 0
        %898 = vmatprep.subr.bf16.mxu0 0
        %899 = vmatpush1.bf16.xpose.msra.mxu0 0
        %900 = vmatprep.subr.bf16.mxu0 0
        %901 = vmatpush1.bf16.xpose.msra.mxu0 0
        %902 = vmatprep.subr.bf16.mxu0 0
        %903 = vmatpush1.bf16.xpose.msra.mxu0 0
        %904 = vmatprep.subr.bf16.mxu0 0
        %905 = vmatpush1.bf16.xpose.msra.mxu0 %v888
        %906 = vmatprep.subr.bf16.mxu0 0
        %907 = vmatpush2.bf16.xpose.msra.mxu0 0
        %908 = vmatprep.subr.bf16.mxu0 0
        %909 = vmatpush2.bf16.xpose.msra.mxu0 0
        %910 = vmatprep.subr.bf16.mxu0 0
        %911 = vmatpush2.bf16.xpose.msra.mxu0 0
        %912 = vmatprep.subr.bf16.mxu0 0
        %913 = vmatpush2.bf16.xpose.msra.mxu0 0
        %914 = vmatprep.subr.bf16.mxu0 0
        %915 = vmatpush2.bf16.xpose.msra.mxu0 0
        %916 = vmatprep.subr.bf16.mxu0 0
        %917 = vmatpush2.bf16.xpose.msra.mxu0 0
        %918 = vmatprep.subr.bf16.mxu0 0
        %919 = vmatpush2.bf16.xpose.msra.mxu0 0
        %920 = vmatprep.subr.bf16.mxu0 0
        %921 = vmatpush2.bf16.xpose.msra.mxu0 0
        %922 = vmatprep.mubr.bf16.mxu0 0
        %923 = vmatmul.mubr.bf16.gmra.mxu0 %v885
        %v924 = vpop.f32.mrf.mxu0
        %v925 = vadd.f32 %v656, %v924
        %v926 = vpop.f32.mrf.mxu0
        %v927 = vpop.f32.mrf.mxu0
        %v928 = vpop.f32.mrf.mxu0
        %929 = vdwg.mxu0
        %931 = vrot.lane.b32.xlu0 %v781, 96
        %v932 = vpop.permute.xlu0 %931
        %v934 = vsel %vm785, %v781, 0
        %v937 = vsel %vm785, %v932, 0
        %939 = vmatprep.subr.bf16.mxu0 0
        %940 = vmatpush1.bf16.xpose.msra.mxu0 0
        %941 = vmatprep.subr.bf16.mxu0 0
        %942 = vmatpush1.bf16.xpose.msra.mxu0 0
        %943 = vmatprep.subr.bf16.mxu0 0
        %944 = vmatpush1.bf16.xpose.msra.mxu0 0
        %945 = vmatprep.subr.bf16.mxu0 0
        %946 = vmatpush1.bf16.xpose.msra.mxu0 0
        %947 = vmatprep.subr.bf16.mxu0 0
        %948 = vmatpush1.bf16.xpose.msra.mxu0 0
        %949 = vmatprep.subr.bf16.mxu0 0
        %950 = vmatpush1.bf16.xpose.msra.mxu0 0
        %951 = vmatprep.subr.bf16.mxu0 0
        %952 = vmatpush1.bf16.xpose.msra.mxu0 0
        %953 = vmatprep.subr.bf16.mxu0 0
        %954 = vmatpush1.bf16.xpose.msra.mxu0 %v937
        %955 = vmatprep.subr.bf16.mxu0 0
        %956 = vmatpush2.bf16.xpose.msra.mxu0 0
        %957 = vmatprep.subr.bf16.mxu0 0
        %958 = vmatpush2.bf16.xpose.msra.mxu0 0
        %959 = vmatprep.subr.bf16.mxu0 0
        %960 = vmatpush2.bf16.xpose.msra.mxu0 0
        %961 = vmatprep.subr.bf16.mxu0 0
        %962 = vmatpush2.bf16.xpose.msra.mxu0 0
        %963 = vmatprep.subr.bf16.mxu0 0
        %964 = vmatpush2.bf16.xpose.msra.mxu0 0
        %965 = vmatprep.subr.bf16.mxu0 0
        %966 = vmatpush2.bf16.xpose.msra.mxu0 0
        %967 = vmatprep.subr.bf16.mxu0 0
        %968 = vmatpush2.bf16.xpose.msra.mxu0 0
        %969 = vmatprep.subr.bf16.mxu0 0
        %970 = vmatpush2.bf16.xpose.msra.mxu0 0
        %971 = vmatprep.mubr.bf16.mxu0 0
        %972 = vmatmul.mubr.bf16.gmra.mxu0 %v934
        %v973 = vpop.f32.mrf.mxu0
        %v974 = vadd.f32 %v656, %v973
        %v975 = vpop.f32.mrf.mxu0
        %v976 = vpop.f32.mrf.mxu0
        %v977 = vpop.f32.mrf.mxu0
        %978 = vdwg.mxu0
        %v979 = vsel %vm785, %v827, -inf
        %980 = vmax.xlane.f32.xlu0 %v979
        %v981 = vpop.xlane.xlu0 %980
        %v982 = vsel %vm785, %v876, -inf
        %983 = vmax.xlane.f32.xlu0 %v982
        %v984 = vpop.xlane.xlu0 %983
        %v985 = vsel %vm785, %v925, -inf
        %986 = vmax.xlane.f32.xlu0 %v985
        %v987 = vpop.xlane.xlu0 %986
        %v988 = vsel %vm785, %v974, -inf
        %989 = vmax.xlane.f32.xlu0 %v988
        %v990 = vpop.xlane.xlu0 %989
        %v991 = vsub.f32 %v827, %v981
        %v992 = vsub.f32 %v876, %v984
        %v993 = vsub.f32 %v925, %v987
        %v994 = vsub.f32 %v974, %v990
        %v995 = vmul.f32 %v991, 1.442695
        %v996 = vpow.pop %v995
        %v997 = vmul.f32 %v992, 1.442695
        %v998 = vpow.pop %v997
        %v999 = vmul.f32 %v993, 1.442695
        %v1000 = vpow.pop %v999
        %v1001 = vmul.f32 %v994, 1.442695
        %v1002 = vpow.pop %v1001
        %v1003 = vsel %vm785, %v996, 0.0
        %1004 = vadd.xlane.f32.xlu0 %v1003
        %v1005 = vpop.xlane.xlu0 %1004
        %v1006 = vsel %vm785, %v998, 0.0
        %1007 = vadd.xlane.f32.xlu0 %v1006
        %v1008 = vpop.xlane.xlu0 %1007
        %v1009 = vsel %vm785, %v1000, 0.0
        %1010 = vadd.xlane.f32.xlu0 %v1009
        %v1011 = vpop.xlane.xlu0 %1010
        %v1012 = vsel %vm785, %v1002, 0.0
        %1013 = vadd.xlane.f32.xlu0 %v1012
        %v1014 = vpop.xlane.xlu0 %1013
        %v1015 = vrcp.pop %v1005
        %v1016 = vrcp.pop %v1008
        %v1017 = vrcp.pop %v1011
        %v1018 = vrcp.pop %v1014
        %v1019 = vmul.f32 %v996, %v1015
        %v1020 = vmul.f32 %v998, %v1016
        %v1021 = vmul.f32 %v1000, %v1017
        %v1022 = vmul.f32 %v1002, %v1018
        %v1023 = vpack.c.bf16 %v1019, %v1019
        %v1024 = vpack.c.bf16 %v1020, %v1020
        %v1025 = vpack.c.bf16 %v1021, %v1021
        %v1026 = vpack.c.bf16 %v1022, %v1022
        %1027 = vrot.lane.b32.xlu0 %v778, 64
        %v1028 = vpop.permute.xlu0 %1027
        %v1030 = vsel %vm785, %v1023, 0
        %vm1032 = vcmask 1043456
        %v1034 = vsel %vm1032, %v1028, 0
        %1036 = vmatprep.subr.bf16.mxu0 0
        %1037 = vmatpush1.bf16.msra.mxu0 0
        %1038 = vmatprep.subr.bf16.mxu0 0
        %1039 = vmatpush1.bf16.msra.mxu0 0
        %1040 = vmatprep.subr.bf16.mxu0 0
        %1041 = vmatpush1.bf16.msra.mxu0 0
        %1042 = vmatprep.subr.bf16.mxu0 0
        %1043 = vmatpush1.bf16.msra.mxu0 0
        %1044 = vmatprep.subr.bf16.mxu0 0
        %1045 = vmatpush1.bf16.msra.mxu0 0
        %1046 = vmatprep.subr.bf16.mxu0 0
        %1047 = vmatpush1.bf16.msra.mxu0 0
        %1048 = vmatprep.subr.bf16.mxu0 0
        %1049 = vmatpush1.bf16.msra.mxu0 0
        %1050 = vmatprep.subr.bf16.mxu0 0
        %1051 = vmatpush1.bf16.msra.mxu0 %v1034
        %1052 = vmatprep.subr.bf16.mxu0 0
        %1053 = vmatpush2.bf16.msra.mxu0 0
        %1054 = vmatprep.subr.bf16.mxu0 0
        %1055 = vmatpush2.bf16.msra.mxu0 0
        %1056 = vmatprep.subr.bf16.mxu0 0
        %1057 = vmatpush2.bf16.msra.mxu0 0
        %1058 = vmatprep.subr.bf16.mxu0 0
        %1059 = vmatpush2.bf16.msra.mxu0 0
        %1060 = vmatprep.subr.bf16.mxu0 0
        %1061 = vmatpush2.bf16.msra.mxu0 0
        %1062 = vmatprep.subr.bf16.mxu0 0
        %1063 = vmatpush2.bf16.msra.mxu0 0
        %1064 = vmatprep.subr.bf16.mxu0 0
        %1065 = vmatpush2.bf16.msra.mxu0 0
        %1066 = vmatprep.subr.bf16.mxu0 0
        %1067 = vmatpush2.bf16.msra.mxu0 0
        %1068 = vmatprep.mubr.bf16.mxu0 0
        %1069 = vmatmul.mubr.bf16.gmra.mxu0 %v1030
        %v1070 = vpop.f32.mrf.mxu0
        %v1071 = vadd.f32 0.0, %v1070
        %v1072 = vpop.f32.mrf.mxu0
        %v1073 = vpop.f32.mrf.mxu0
        %v1074 = vpop.f32.mrf.mxu0
        %1075 = vdwg.mxu0
        %1076 = vrot.lane.b32.xlu0 %v779, 64
        %v1077 = vpop.permute.xlu0 %1076
        %v1079 = vsel %vm785, %v1024, 0
        %v1082 = vsel %vm1032, %v1077, 0
        %1084 = vmatprep.subr.bf16.mxu0 0
        %1085 = vmatpush1.bf16.msra.mxu0 0
        %1086 = vmatprep.subr.bf16.mxu0 0
        %1087 = vmatpush1.bf16.msra.mxu0 0
        %1088 = vmatprep.subr.bf16.mxu0 0
        %1089 = vmatpush1.bf16.msra.mxu0 0
        %1090 = vmatprep.subr.bf16.mxu0 0
        %1091 = vmatpush1.bf16.msra.mxu0 0
        %1092 = vmatprep.subr.bf16.mxu0 0
        %1093 = vmatpush1.bf16.msra.mxu0 0
        %1094 = vmatprep.subr.bf16.mxu0 0
        %1095 = vmatpush1.bf16.msra.mxu0 0
        %1096 = vmatprep.subr.bf16.mxu0 0
        %1097 = vmatpush1.bf16.msra.mxu0 0
        %1098 = vmatprep.subr.bf16.mxu0 0
        %1099 = vmatpush1.bf16.msra.mxu0 %v1082
        %1100 = vmatprep.subr.bf16.mxu0 0
        %1101 = vmatpush2.bf16.msra.mxu0 0
        %1102 = vmatprep.subr.bf16.mxu0 0
        %1103 = vmatpush2.bf16.msra.mxu0 0
        %1104 = vmatprep.subr.bf16.mxu0 0
        %1105 = vmatpush2.bf16.msra.mxu0 0
        %1106 = vmatprep.subr.bf16.mxu0 0
        %1107 = vmatpush2.bf16.msra.mxu0 0
        %1108 = vmatprep.subr.bf16.mxu0 0
        %1109 = vmatpush2.bf16.msra.mxu0 0
        %1110 = vmatprep.subr.bf16.mxu0 0
        %1111 = vmatpush2.bf16.msra.mxu0 0
        %1112 = vmatprep.subr.bf16.mxu0 0
        %1113 = vmatpush2.bf16.msra.mxu0 0
        %1114 = vmatprep.subr.bf16.mxu0 0
        %1115 = vmatpush2.bf16.msra.mxu0 0
        %1116 = vmatprep.mubr.bf16.mxu0 0
        %1117 = vmatmul.mubr.bf16.gmra.mxu0 %v1079
        %v1118 = vpop.f32.mrf.mxu0
        %v1119 = vadd.f32 0.0, %v1118
        %v1120 = vpop.f32.mrf.mxu0
        %v1121 = vpop.f32.mrf.mxu0
        %v1122 = vpop.f32.mrf.mxu0
        %1123 = vdwg.mxu0
        %1124 = vrot.lane.b32.xlu0 %v780, 64
        %v1125 = vpop.permute.xlu0 %1124
        %v1127 = vsel %vm785, %v1025, 0
        %v1130 = vsel %vm1032, %v1125, 0
        %1132 = vmatprep.subr.bf16.mxu0 0
        %1133 = vmatpush1.bf16.msra.mxu0 0
        %1134 = vmatprep.subr.bf16.mxu0 0
        %1135 = vmatpush1.bf16.msra.mxu0 0
        %1136 = vmatprep.subr.bf16.mxu0 0
        %1137 = vmatpush1.bf16.msra.mxu0 0
        %1138 = vmatprep.subr.bf16.mxu0 0
        %1139 = vmatpush1.bf16.msra.mxu0 0
        %1140 = vmatprep.subr.bf16.mxu0 0
        %1141 = vmatpush1.bf16.msra.mxu0 0
        %1142 = vmatprep.subr.bf16.mxu0 0
        %1143 = vmatpush1.bf16.msra.mxu0 0
        %1144 = vmatprep.subr.bf16.mxu0 0
        %1145 = vmatpush1.bf16.msra.mxu0 0
        %1146 = vmatprep.subr.bf16.mxu0 0
        %1147 = vmatpush1.bf16.msra.mxu0 %v1130
        %1148 = vmatprep.subr.bf16.mxu0 0
        %1149 = vmatpush2.bf16.msra.mxu0 0
        %1150 = vmatprep.subr.bf16.mxu0 0
        %1151 = vmatpush2.bf16.msra.mxu0 0
        %1152 = vmatprep.subr.bf16.mxu0 0
        %1153 = vmatpush2.bf16.msra.mxu0 0
        %1154 = vmatprep.subr.bf16.mxu0 0
        %1155 = vmatpush2.bf16.msra.mxu0 0
        %1156 = vmatprep.subr.bf16.mxu0 0
        %1157 = vmatpush2.bf16.msra.mxu0 0
        %1158 = vmatprep.subr.bf16.mxu0 0
        %1159 = vmatpush2.bf16.msra.mxu0 0
        %1160 = vmatprep.subr.bf16.mxu0 0
        %1161 = vmatpush2.bf16.msra.mxu0 0
        %1162 = vmatprep.subr.bf16.mxu0 0
        %1163 = vmatpush2.bf16.msra.mxu0 0
        %1164 = vmatprep.mubr.bf16.mxu0 0
        %1165 = vmatmul.mubr.bf16.gmra.mxu0 %v1127
        %v1166 = vpop.f32.mrf.mxu0
        %v1167 = vadd.f32 0.0, %v1166
        %v1168 = vpop.f32.mrf.mxu0
        %v1169 = vpop.f32.mrf.mxu0
        %v1170 = vpop.f32.mrf.mxu0
        %1171 = vdwg.mxu0
        %1172 = vrot.lane.b32.xlu0 %v781, 64
        %v1173 = vpop.permute.xlu0 %1172
        %v1175 = vsel %vm785, %v1026, 0
        %v1178 = vsel %vm1032, %v1173, 0
        %1180 = vmatprep.subr.bf16.mxu0 0
        %1181 = vmatpush1.bf16.msra.mxu0 0
        %1182 = vmatprep.subr.bf16.mxu0 0
        %1183 = vmatpush1.bf16.msra.mxu0 0
        %1184 = vmatprep.subr.bf16.mxu0 0
        %1185 = vmatpush1.bf16.msra.mxu0 0
        %1186 = vmatprep.subr.bf16.mxu0 0
        %1187 = vmatpush1.bf16.msra.mxu0 0
        %1188 = vmatprep.subr.bf16.mxu0 0
        %1189 = vmatpush1.bf16.msra.mxu0 0
        %1190 = vmatprep.subr.bf16.mxu0 0
        %1191 = vmatpush1.bf16.msra.mxu0 0
        %1192 = vmatprep.subr.bf16.mxu0 0
        %1193 = vmatpush1.bf16.msra.mxu0 0
        %1194 = vmatprep.subr.bf16.mxu0 0
        %1195 = vmatpush1.bf16.msra.mxu0 %v1178
        %1196 = vmatprep.subr.bf16.mxu0 0
        %1197 = vmatpush2.bf16.msra.mxu0 0
        %1198 = vmatprep.subr.bf16.mxu0 0
        %1199 = vmatpush2.bf16.msra.mxu0 0
        %1200 = vmatprep.subr.bf16.mxu0 0
        %1201 = vmatpush2.bf16.msra.mxu0 0
        %1202 = vmatprep.subr.bf16.mxu0 0
        %1203 = vmatpush2.bf16.msra.mxu0 0
        %1204 = vmatprep.subr.bf16.mxu0 0
        %1205 = vmatpush2.bf16.msra.mxu0 0
        %1206 = vmatprep.subr.bf16.mxu0 0
        %1207 = vmatpush2.bf16.msra.mxu0 0
        %1208 = vmatprep.subr.bf16.mxu0 0
        %1209 = vmatpush2.bf16.msra.mxu0 0
        %1210 = vmatprep.subr.bf16.mxu0 0
        %1211 = vmatpush2.bf16.msra.mxu0 0
        %1212 = vmatprep.mubr.bf16.mxu0 0
        %1213 = vmatmul.mubr.bf16.gmra.mxu0 %v1175
        %v1214 = vpop.f32.mrf.mxu0
        %v1215 = vadd.f32 0.0, %v1214
        %v1216 = vpop.f32.mrf.mxu0
        %v1217 = vpop.f32.mrf.mxu0
        %v1218 = vpop.f32.mrf.mxu0
        %1219 = vdwg.mxu0
        %1221 = vrot.lane.b32.xlu0 %v1119, 8
        %v1222 = vpop.permute.xlu0 %1221
        %1225 = vrot.lane.b32.xlu0 %v1167, 16
        %v1226 = vpop.permute.xlu0 %1225
        %1229 = vrot.lane.b32.xlu0 %v1215, 24
        %v1230 = vpop.permute.xlu0 %1229
        %v1232 = vsel %vm785, %v1071, %v1222
        %vm1233 = vcmask 130048
        %v1234 = vsel %vm1233, %v1232, %v1226
        %vm1235 = vcmask 195584
        %v1236 = vsel %vm1235, %v1234, %v1230
        %v1237 = vpack.c.bf16 %v1236, %v1236
        %v1239 = vlaneseq
        %v1240 = vshrl.u32 %v1239, 7
        %v1241 = vsub.s32 0, %v1240
        %v1242 = vrot.slane %v767, %v1241
        %v1248 = vunpack.c.l.b16 %v763
        %v1249 = vunpack.c.l.b16 %v764
        %v1250 = vunpack.c.l.b16 %v765
        %v1251 = vunpack.c.l.b16 %v766
        %v1252 = vpack.c.b16 %v1249, %v1248
        %v1253 = vpack.c.b16 %v1251, %v1250
        %v1257 = vsel %vm663, %v1237, 0
        %1259 = vmatprep.subr.bf16.mxu0 0
        %1260 = vmatpush1.bf16.msra.mxu0 0
        %1261 = vmatprep.subr.bf16.mxu0 0
        %1262 = vmatpush1.bf16.msra.mxu0 0
        %1263 = vmatprep.subr.bf16.mxu0 0
        %1264 = vmatpush1.bf16.msra.mxu0 0
        %1265 = vmatprep.subr.bf16.mxu0 0
        %1266 = vmatpush1.bf16.msra.mxu0 0
        %1267 = vmatprep.subr.bf16.mxu0 0
        %1268 = vmatpush1.bf16.msra.mxu0 0
        %1269 = vmatprep.subr.bf16.mxu0 0
        %1270 = vmatpush1.bf16.msra.mxu0 0
        %1271 = vmatprep.subr.bf16.mxu0 0
        %1272 = vmatpush1.bf16.msra.mxu0 %v1253
        %1273 = vmatprep.subr.bf16.mxu0 0
        %1274 = vmatpush1.bf16.msra.mxu0 %v1252
        %1275 = vmatprep.subr.bf16.mxu0 0
        %1276 = vmatpush2.bf16.msra.mxu0 0
        %1277 = vmatprep.subr.bf16.mxu0 0
        %1278 = vmatpush2.bf16.msra.mxu0 0
        %1279 = vmatprep.subr.bf16.mxu0 0
        %1280 = vmatpush2.bf16.msra.mxu0 0
        %1281 = vmatprep.subr.bf16.mxu0 0
        %1282 = vmatpush2.bf16.msra.mxu0 0
        %1283 = vmatprep.subr.bf16.mxu0 0
        %1284 = vmatpush2.bf16.msra.mxu0 0
        %1285 = vmatprep.subr.bf16.mxu0 0
        %1286 = vmatpush2.bf16.msra.mxu0 0
        %1287 = vmatprep.subr.bf16.mxu0 0
        %1288 = vmatpush2.bf16.msra.mxu0 0
        %1289 = vmatprep.subr.bf16.mxu0 0
        %1290 = vmatpush2.bf16.msra.mxu0 0
        %1291 = vmatprep.mubr.bf16.mxu0 0
        %1292 = vmatmul.mubr.bf16.gmra.mxu0 %v1257
        %v1293 = vpop.f32.mrf.mxu0
        %v1294 = vadd.f32 %v1242, %v1293
        %v1295 = vpop.f32.mrf.mxu0
        %v1296 = vpop.f32.mrf.mxu0
        %v1297 = vpop.f32.mrf.mxu0
        %1298 = vdwg.mxu0
        %v1299 = vadd.f32 %v648, %v1294
        %v1300 = vld [vmem:[%s17 + $0x1] sm:$0x1]
        %v1301 = vld [vmem:[%s18 + $0x1] sm:$0x1]
        %v1302 = vsel %vm663, %v1299, 0.0
        %1303 = vadd.xlane.f32.xlu0 %v1302
        %v1304 = vpop.xlane.xlu0 %1303
        %v1305 = vmul.f32 %v1304, %v667
        %v1306 = vsub.f32 %v1299, %v1305
        %v1307 = vmul.f32 %v1306, %v1306
        %v1308 = vsel %vm663, %v1307, 0.0
        %1309 = vadd.xlane.f32.xlu0 %v1308
        %v1310 = vpop.xlane.xlu0 %1309
        %v1311 = vmul.f32 %v1310, 0.032258064
        %v1312 = vrsqrt.pop %v1311
        %v1313 = vmul.f32 %v1311, %v1312
        %vm1314 = vcmp.eq.f32.partialorder %v1311, inf
        %v1315 = vsel %vm1314, %v1311, %v1313
        %vm1316 = vcmp.eq.f32.partialorder %v1311, 0.0
        %v1317 = vand.u32 %v1311, 2147483648
        %v1318 = vsel %vm1316, %v1317, %v1315
        %v1319 = vadd.f32 %v1318, 1e-06
        %v1320 = vrcp.pop %v1319
        %v1321 = vmul.f32 1.0, %v1320
        %v1322 = vmul.f32 %v1306, %v1321
        %v1323 = vlaneseq
        %v1324 = vshrl.u32 %v1323, 7
        %v1325 = vsub.s32 0, %v1324
        %v1326 = vrot.slane %v1300, %v1325
        %v1327 = vmul.f32 %v1326, %v1322
        %v1328 = vlaneseq
        %v1329 = vshrl.u32 %v1328, 7
        %v1330 = vsub.s32 0, %v1329
        %v1331 = vrot.slane %v1301, %v1330
        %v1332 = vadd.f32 %v1327, %v1331
        %v1333 = vpack.c.bf16 %v1332, %v1332
        %v1334 = vld [vmem:[%s7] sm:$0xf]
        %v1335 = vld [vmem:[%s7 + $0x4] sm:$0xf]
        %v1336 = vld [vmem:[%s7 + $0x8] sm:$0xf]
        %v1337 = vld [vmem:[%s7 + $0xc] sm:$0xf]
        %v1338 = vld [vmem:[#allocation9] sm:$0x1]
        %v1340 = vlaneseq
        %v1341 = vshrl.u32 %v1340, 7
        %v1342 = vsub.s32 0, %v1341
        %v1343 = vrot.slane %v1338, %v1342
        %v1349 = vunpack.c.l.b16 %v1334
        %v1350 = vunpack.c.l.b16 %v1335
        %v1351 = vunpack.c.l.b16 %v1336
        %v1352 = vunpack.c.l.b16 %v1337
        %v1353 = vpack.c.b16 %v1350, %v1349
        %v1354 = vpack.c.b16 %v1352, %v1351
        %v1358 = vsel %vm663, %v1333, 0
        %1360 = vmatprep.subr.bf16.mxu0 0
        %1361 = vmatpush1.bf16.msra.mxu0 0
        %1362 = vmatprep.subr.bf16.mxu0 0
        %1363 = vmatpush1.bf16.msra.mxu0 0
        %1364 = vmatprep.subr.bf16.mxu0 0
        %1365 = vmatpush1.bf16.msra.mxu0 0
        %1366 = vmatprep.subr.bf16.mxu0 0
        %1367 = vmatpush1.bf16.msra.mxu0 0
        %1368 = vmatprep.subr.bf16.mxu0 0
        %1369 = vmatpush1.bf16.msra.mxu0 0
        %1370 = vmatprep.subr.bf16.mxu0 0
        %1371 = vmatpush1.bf16.msra.mxu0 0
        %1372 = vmatprep.subr.bf16.mxu0 0
        %1373 = vmatpush1.bf16.msra.mxu0 %v1354
        %1374 = vmatprep.subr.bf16.mxu0 0
        %1375 = vmatpush1.bf16.msra.mxu0 %v1353
        %1376 = vmatprep.subr.bf16.mxu0 0
        %1377 = vmatpush2.bf16.msra.mxu0 0
        %1378 = vmatprep.subr.bf16.mxu0 0
        %1379 = vmatpush2.bf16.msra.mxu0 0
        %1380 = vmatprep.subr.bf16.mxu0 0
        %1381 = vmatpush2.bf16.msra.mxu0 0
        %1382 = vmatprep.subr.bf16.mxu0 0
        %1383 = vmatpush2.bf16.msra.mxu0 0
        %1384 = vmatprep.subr.bf16.mxu0 0
        %1385 = vmatpush2.bf16.msra.mxu0 0
        %1386 = vmatprep.subr.bf16.mxu0 0
        %1387 = vmatpush2.bf16.msra.mxu0 0
        %1388 = vmatprep.subr.bf16.mxu0 0
        %1389 = vmatpush2.bf16.msra.mxu0 0
        %1390 = vmatprep.subr.bf16.mxu0 0
        %1391 = vmatpush2.bf16.msra.mxu0 0
        %1392 = vmatprep.mubr.bf16.mxu0 0
        %1393 = vmatmul.mubr.bf16.gmra.mxu0 %v1358
        %v1394 = vpop.f32.mrf.mxu0
        %v1395 = vadd.f32 %v1343, %v1394
        %v1396 = vpop.f32.mrf.mxu0
        %v1397 = vpop.f32.mrf.mxu0
        %v1398 = vpop.f32.mrf.mxu0
        %1399 = vdwg.mxu0
        %v1400 = vpack.c.bf16 %v650, %v649
        %v1401 = vld [vmem:[%s9] sm:$0xf]
        %v1402 = vld [vmem:[%s9 + $0x4] sm:$0xf]
        %v1403 = vld [vmem:[%s9 + $0x8] sm:$0xf]
        %v1404 = vld [vmem:[%s9 + $0xc] sm:$0xf]
        %v1405 = vld [vmem:[#allocation10] sm:$0x1]
        %v1407 = vlaneseq
        %v1408 = vshrl.u32 %v1407, 7
        %v1409 = vsub.s32 0, %v1408
        %v1410 = vrot.slane %v1405, %v1409
        %v1416 = vunpack.c.l.b16 %v1401
        %v1417 = vunpack.c.l.b16 %v1402
        %v1418 = vunpack.c.l.b16 %v1403
        %v1419 = vunpack.c.l.b16 %v1404
        %v1420 = vpack.c.b16 %v1417, %v1416
        %v1421 = vpack.c.b16 %v1419, %v1418
        %v1425 = vsel %vm663, %v1400, 0
        %1427 = vmatprep.subr.bf16.mxu0 0
        %1428 = vmatpush1.bf16.msra.mxu0 0
        %1429 = vmatprep.subr.bf16.mxu0 0
        %1430 = vmatpush1.bf16.msra.mxu0 0
        %1431 = vmatprep.subr.bf16.mxu0 0
        %1432 = vmatpush1.bf16.msra.mxu0 0
        %1433 = vmatprep.subr.bf16.mxu0 0
        %1434 = vmatpush1.bf16.msra.mxu0 0
        %1435 = vmatprep.subr.bf16.mxu0 0
        %1436 = vmatpush1.bf16.msra.mxu0 0
        %1437 = vmatprep.subr.bf16.mxu0 0
        %1438 = vmatpush1.bf16.msra.mxu0 0
        %1439 = vmatprep.subr.bf16.mxu0 0
        %1440 = vmatpush1.bf16.msra.mxu0 %v1421
        %1441 = vmatprep.subr.bf16.mxu0 0
        %1442 = vmatpush1.bf16.msra.mxu0 %v1420
        %1443 = vmatprep.subr.bf16.mxu0 0
        %1444 = vmatpush2.bf16.msra.mxu0 0
        %1445 = vmatprep.subr.bf16.mxu0 0
        %1446 = vmatpush2.bf16.msra.mxu0 0
        %1447 = vmatprep.subr.bf16.mxu0 0
        %1448 = vmatpush2.bf16.msra.mxu0 0
        %1449 = vmatprep.subr.bf16.mxu0 0
        %1450 = vmatpush2.bf16.msra.mxu0 0
        %1451 = vmatprep.subr.bf16.mxu0 0
        %1452 = vmatpush2.bf16.msra.mxu0 0
        %1453 = vmatprep.subr.bf16.mxu0 0
        %1454 = vmatpush2.bf16.msra.mxu0 0
        %1455 = vmatprep.subr.bf16.mxu0 0
        %1456 = vmatpush2.bf16.msra.mxu0 0
        %1457 = vmatprep.subr.bf16.mxu0 0
        %1458 = vmatpush2.bf16.msra.mxu0 0
        %1459 = vmatprep.mubr.bf16.mxu0 0
        %1460 = vmatmul.mubr.bf16.gmra.mxu0 %v1425
        %v1461 = vpop.f32.mrf.mxu0
        %v1462 = vadd.f32 %v1410, %v1461
        %v1463 = vpop.f32.mrf.mxu0
        %v1464 = vpop.f32.mrf.mxu0
        %v1465 = vadd.f32 %v1410, %v1464
        %v1466 = vpop.f32.mrf.mxu0
        %1467 = vdwg.mxu0
        %v1468 = vld [vmem:[%s11] sm:$0xf]
        %v1469 = vld [vmem:[%s11 + $0x4] sm:$0xf]
        %v1470 = vld [vmem:[%s11 + $0x8] sm:$0xf]
        %v1471 = vld [vmem:[%s11 + $0xc] sm:$0xf]
        %v1472 = vld [vmem:[%s12] sm:$0x1]
        %1474 = vrot.lane.b32.xlu0 %v1395, 120
        %v1475 = vpop.permute.xlu0 %1474
        %1477 = vrot.lane.b32.xlu0 %v1395, 112
        %v1478 = vpop.permute.xlu0 %1477
        %1480 = vrot.lane.b32.xlu0 %v1395, 104
        %v1481 = vpop.permute.xlu0 %1480
        %v1483 = vpack.c.bf16 %v1395, %v1395
        %v1484 = vpack.c.bf16 %v1475, %v1475
        %v1485 = vpack.c.bf16 %v1478, %v1478
        %v1486 = vpack.c.bf16 %v1481, %v1481
        %1489 = vrot.lane.b32.xlu0 %v1462, 120
        %v1490 = vpop.permute.xlu0 %1489
        %1491 = vrot.lane.b32.xlu0 %v1465, 120
        %v1492 = vpop.permute.xlu0 %1491
        %1495 = vrot.lane.b32.xlu0 %v1462, 112
        %v1496 = vpop.permute.xlu0 %1495
        %1497 = vrot.lane.b32.xlu0 %v1465, 112
        %v1498 = vpop.permute.xlu0 %1497
        %1501 = vrot.lane.b32.xlu0 %v1462, 104
        %v1502 = vpop.permute.xlu0 %1501
        %1503 = vrot.lane.b32.xlu0 %v1465, 104
        %v1504 = vpop.permute.xlu0 %1503
        %v1507 = vpack.c.bf16 %v1465, %v1462
        %v1508 = vpack.c.bf16 %v1492, %v1490
        %v1509 = vpack.c.bf16 %v1498, %v1496
        %v1510 = vpack.c.bf16 %v1504, %v1502
        %v1512 = vsel %vm785, %v1483, 0
        %v1515 = vsel %vm785, %v1507, 0
        %1517 = vmatprep.subr.bf16.mxu0 0
        %1518 = vmatpush1.bf16.xpose.msra.mxu0 0
        %1519 = vmatprep.subr.bf16.mxu0 0
        %1520 = vmatpush1.bf16.xpose.msra.mxu0 0
        %1521 = vmatprep.subr.bf16.mxu0 0
        %1522 = vmatpush1.bf16.xpose.msra.mxu0 0
        %1523 = vmatprep.subr.bf16.mxu0 0
        %1524 = vmatpush1.bf16.xpose.msra.mxu0 0
        %1525 = vmatprep.subr.bf16.mxu0 0
        %1526 = vmatpush1.bf16.xpose.msra.mxu0 0
        %1527 = vmatprep.subr.bf16.mxu0 0
        %1528 = vmatpush1.bf16.xpose.msra.mxu0 0
        %1529 = vmatprep.subr.bf16.mxu0 0
        %1530 = vmatpush1.bf16.xpose.msra.mxu0 0
        %1531 = vmatprep.subr.bf16.mxu0 0
        %1532 = vmatpush1.bf16.xpose.msra.mxu0 %v1515
        %1533 = vmatprep.subr.bf16.mxu0 0
        %1534 = vmatpush2.bf16.xpose.msra.mxu0 0
        %1535 = vmatprep.subr.bf16.mxu0 0
        %1536 = vmatpush2.bf16.xpose.msra.mxu0 0
        %1537 = vmatprep.subr.bf16.mxu0 0
        %1538 = vmatpush2.bf16.xpose.msra.mxu0 0
        %1539 = vmatprep.subr.bf16.mxu0 0
        %1540 = vmatpush2.bf16.xpose.msra.mxu0 0
        %1541 = vmatprep.subr.bf16.mxu0 0
        %1542 = vmatpush2.bf16.xpose.msra.mxu0 0
        %1543 = vmatprep.subr.bf16.mxu0 0
        %1544 = vmatpush2.bf16.xpose.msra.mxu0 0
        %1545 = vmatprep.subr.bf16.mxu0 0
        %1546 = vmatpush2.bf16.xpose.msra.mxu0 0
        %1547 = vmatprep.subr.bf16.mxu0 0
        %1548 = vmatpush2.bf16.xpose.msra.mxu0 0
        %1549 = vmatprep.mubr.bf16.mxu0 0
        %1550 = vmatmul.mubr.bf16.gmra.mxu0 %v1512
        %v1551 = vpop.f32.mrf.mxu0
        %v1552 = vadd.f32 %v660, %v1551
        %v1553 = vpop.f32.mrf.mxu0
        %v1554 = vpop.f32.mrf.mxu0
        %v1555 = vpop.f32.mrf.mxu0
        %1556 = vdwg.mxu0
        %v1558 = vsel %vm785, %v1484, 0
        %v1561 = vsel %vm785, %v1508, 0
        %1563 = vmatprep.subr.bf16.mxu0 0
        %1564 = vmatpush1.bf16.xpose.msra.mxu0 0
        %1565 = vmatprep.subr.bf16.mxu0 0
        %1566 = vmatpush1.bf16.xpose.msra.mxu0 0
        %1567 = vmatprep.subr.bf16.mxu0 0
        %1568 = vmatpush1.bf16.xpose.msra.mxu0 0
        %1569 = vmatprep.subr.bf16.mxu0 0
        %1570 = vmatpush1.bf16.xpose.msra.mxu0 0
        %1571 = vmatprep.subr.bf16.mxu0 0
        %1572 = vmatpush1.bf16.xpose.msra.mxu0 0
        %1573 = vmatprep.subr.bf16.mxu0 0
        %1574 = vmatpush1.bf16.xpose.msra.mxu0 0
        %1575 = vmatprep.subr.bf16.mxu0 0
        %1576 = vmatpush1.bf16.xpose.msra.mxu0 0
        %1577 = vmatprep.subr.bf16.mxu0 0
        %1578 = vmatpush1.bf16.xpose.msra.mxu0 %v1561
        %1579 = vmatprep.subr.bf16.mxu0 0
        %1580 = vmatpush2.bf16.xpose.msra.mxu0 0
        %1581 = vmatprep.subr.bf16.mxu0 0
        %1582 = vmatpush2.bf16.xpose.msra.mxu0 0
        %1583 = vmatprep.subr.bf16.mxu0 0
        %1584 = vmatpush2.bf16.xpose.msra.mxu0 0
        %1585 = vmatprep.subr.bf16.mxu0 0
        %1586 = vmatpush2.bf16.xpose.msra.mxu0 0
        %1587 = vmatprep.subr.bf16.mxu0 0
        %1588 = vmatpush2.bf16.xpose.msra.mxu0 0
        %1589 = vmatprep.subr.bf16.mxu0 0
        %1590 = vmatpush2.bf16.xpose.msra.mxu0 0
        %1591 = vmatprep.subr.bf16.mxu0 0
        %1592 = vmatpush2.bf16.xpose.msra.mxu0 0
        %1593 = vmatprep.subr.bf16.mxu0 0
        %1594 = vmatpush2.bf16.xpose.msra.mxu0 0
        %1595 = vmatprep.mubr.bf16.mxu0 0
        %1596 = vmatmul.mubr.bf16.gmra.mxu0 %v1558
        %v1597 = vpop.f32.mrf.mxu0
        %v1598 = vadd.f32 %v660, %v1597
        %v1599 = vpop.f32.mrf.mxu0
        %v1600 = vpop.f32.mrf.mxu0
        %v1601 = vpop.f32.mrf.mxu0
        %1602 = vdwg.mxu0
        %v1604 = vsel %vm785, %v1485, 0
        %v1607 = vsel %vm785, %v1509, 0
        %1609 = vmatprep.subr.bf16.mxu0 0
        %1610 = vmatpush1.bf16.xpose.msra.mxu0 0
        %1611 = vmatprep.subr.bf16.mxu0 0
        %1612 = vmatpush1.bf16.xpose.msra.mxu0 0
        %1613 = vmatprep.subr.bf16.mxu0 0
        %1614 = vmatpush1.bf16.xpose.msra.mxu0 0
        %1615 = vmatprep.subr.bf16.mxu0 0
        %1616 = vmatpush1.bf16.xpose.msra.mxu0 0
        %1617 = vmatprep.subr.bf16.mxu0 0
        %1618 = vmatpush1.bf16.xpose.msra.mxu0 0
        %1619 = vmatprep.subr.bf16.mxu0 0
        %1620 = vmatpush1.bf16.xpose.msra.mxu0 0
        %1621 = vmatprep.subr.bf16.mxu0 0
        %1622 = vmatpush1.bf16.xpose.msra.mxu0 0
        %1623 = vmatprep.subr.bf16.mxu0 0
        %1624 = vmatpush1.bf16.xpose.msra.mxu0 %v1607
        %1625 = vmatprep.subr.bf16.mxu0 0
        %1626 = vmatpush2.bf16.xpose.msra.mxu0 0
        %1627 = vmatprep.subr.bf16.mxu0 0
        %1628 = vmatpush2.bf16.xpose.msra.mxu0 0
        %1629 = vmatprep.subr.bf16.mxu0 0
        %1630 = vmatpush2.bf16.xpose.msra.mxu0 0
        %1631 = vmatprep.subr.bf16.mxu0 0
        %1632 = vmatpush2.bf16.xpose.msra.mxu0 0
        %1633 = vmatprep.subr.bf16.mxu0 0
        %1634 = vmatpush2.bf16.xpose.msra.mxu0 0
        %1635 = vmatprep.subr.bf16.mxu0 0
        %1636 = vmatpush2.bf16.xpose.msra.mxu0 0
        %1637 = vmatprep.subr.bf16.mxu0 0
        %1638 = vmatpush2.bf16.xpose.msra.mxu0 0
        %1639 = vmatprep.subr.bf16.mxu0 0
        %1640 = vmatpush2.bf16.xpose.msra.mxu0 0
        %1641 = vmatprep.mubr.bf16.mxu0 0
        %1642 = vmatmul.mubr.bf16.gmra.mxu0 %v1604
        %v1643 = vpop.f32.mrf.mxu0
        %v1644 = vadd.f32 %v660, %v1643
        %v1645 = vpop.f32.mrf.mxu0
        %v1646 = vpop.f32.mrf.mxu0
        %v1647 = vpop.f32.mrf.mxu0
        %1648 = vdwg.mxu0
        %v1650 = vsel %vm785, %v1486, 0
        %v1653 = vsel %vm785, %v1510, 0
        %1655 = vmatprep.subr.bf16.mxu0 0
        %1656 = vmatpush1.bf16.xpose.msra.mxu0 0
        %1657 = vmatprep.subr.bf16.mxu0 0
        %1658 = vmatpush1.bf16.xpose.msra.mxu0 0
        %1659 = vmatprep.subr.bf16.mxu0 0
        %1660 = vmatpush1.bf16.xpose.msra.mxu0 0
        %1661 = vmatprep.subr.bf16.mxu0 0
        %1662 = vmatpush1.bf16.xpose.msra.mxu0 0
        %1663 = vmatprep.subr.bf16.mxu0 0
        %1664 = vmatpush1.bf16.xpose.msra.mxu0 0
        %1665 = vmatprep.subr.bf16.mxu0 0
        %1666 = vmatpush1.bf16.xpose.msra.mxu0 0
        %1667 = vmatprep.subr.bf16.mxu0 0
        %1668 = vmatpush1.bf16.xpose.msra.mxu0 0
        %1669 = vmatprep.subr.bf16.mxu0 0
        %1670 = vmatpush1.bf16.xpose.msra.mxu0 %v1653
        %1671 = vmatprep.subr.bf16.mxu0 0
        %1672 = vmatpush2.bf16.xpose.msra.mxu0 0
        %1673 = vmatprep.subr.bf16.mxu0 0
        %1674 = vmatpush2.bf16.xpose.msra.mxu0 0
        %1675 = vmatprep.subr.bf16.mxu0 0
        %1676 = vmatpush2.bf16.xpose.msra.mxu0 0
        %1677 = vmatprep.subr.bf16.mxu0 0
        %1678 = vmatpush2.bf16.xpose.msra.mxu0 0
        %1679 = vmatprep.subr.bf16.mxu0 0
        %1680 = vmatpush2.bf16.xpose.msra.mxu0 0
        %1681 = vmatprep.subr.bf16.mxu0 0
        %1682 = vmatpush2.bf16.xpose.msra.mxu0 0
        %1683 = vmatprep.subr.bf16.mxu0 0
        %1684 = vmatpush2.bf16.xpose.msra.mxu0 0
        %1685 = vmatprep.subr.bf16.mxu0 0
        %1686 = vmatpush2.bf16.xpose.msra.mxu0 0
        %1687 = vmatprep.mubr.bf16.mxu0 0
        %1688 = vmatmul.mubr.bf16.gmra.mxu0 %v1650
        %v1689 = vpop.f32.mrf.mxu0
        %v1690 = vadd.f32 %v660, %v1689
        %v1691 = vpop.f32.mrf.mxu0
        %v1692 = vpop.f32.mrf.mxu0
        %v1693 = vpop.f32.mrf.mxu0
        %1694 = vdwg.mxu0
        %vm1695 = vcmask 80896
        %v1696 = vsel %vm1695, %v1552, -inf
        %1697 = vmax.xlane.f32.xlu0 %v1696
        %v1698 = vpop.xlane.xlu0 %1697
        %v1699 = vsel %vm1695, %v1598, -inf
        %1700 = vmax.xlane.f32.xlu0 %v1699
        %v1701 = vpop.xlane.xlu0 %1700
        %v1702 = vsel %vm1695, %v1644, -inf
        %1703 = vmax.xlane.f32.xlu0 %v1702
        %v1704 = vpop.xlane.xlu0 %1703
        %v1705 = vsel %vm1695, %v1690, -inf
        %1706 = vmax.xlane.f32.xlu0 %v1705
        %v1707 = vpop.xlane.xlu0 %1706
        %v1708 = vsub.f32 %v1552, %v1698
        %v1709 = vsub.f32 %v1598, %v1701
        %v1710 = vsub.f32 %v1644, %v1704
        %v1711 = vsub.f32 %v1690, %v1707
        %v1712 = vmul.f32 %v1708, 1.442695
        %v1713 = vpow.pop %v1712
        %v1714 = vmul.f32 %v1709, 1.442695
        %v1715 = vpow.pop %v1714
        %v1716 = vmul.f32 %v1710, 1.442695
        %v1717 = vpow.pop %v1716
        %v1718 = vmul.f32 %v1711, 1.442695
        %v1719 = vpow.pop %v1718
        %v1720 = vsel %vm1695, %v1713, 0.0
        %1721 = vadd.xlane.f32.xlu0 %v1720
        %v1722 = vpop.xlane.xlu0 %1721
        %v1723 = vsel %vm1695, %v1715, 0.0
        %1724 = vadd.xlane.f32.xlu0 %v1723
        %v1725 = vpop.xlane.xlu0 %1724
        %v1726 = vsel %vm1695, %v1717, 0.0
        %1727 = vadd.xlane.f32.xlu0 %v1726
        %v1728 = vpop.xlane.xlu0 %1727
        %v1729 = vsel %vm1695, %v1719, 0.0
        %1730 = vadd.xlane.f32.xlu0 %v1729
        %v1731 = vpop.xlane.xlu0 %1730
        %v1732 = vrcp.pop %v1722
        %v1733 = vrcp.pop %v1725
        %v1734 = vrcp.pop %v1728
        %v1735 = vrcp.pop %v1731
        %v1736 = vmul.f32 %v1713, %v1732
        %v1737 = vmul.f32 %v1715, %v1733
        %v1738 = vmul.f32 %v1717, %v1734
        %v1739 = vmul.f32 %v1719, %v1735
        %v1740 = vpack.c.bf16 %v1736, %v1736
        %v1741 = vpack.c.bf16 %v1737, %v1737
        %v1742 = vpack.c.bf16 %v1738, %v1738
        %v1743 = vpack.c.bf16 %v1739, %v1739
        %1745 = vrot.lane.b32.xlu0 %v1507, 96
        %v1746 = vpop.permute.xlu0 %1745
        %v1748 = vsel %vm1695, %v1740, 0
        %vm1750 = vcmask 1044480
        %v1752 = vsel %vm1750, %v1746, 0
        %1754 = vmatprep.subr.bf16.mxu0 0
        %1755 = vmatpush1.bf16.msra.mxu0 0
        %1756 = vmatprep.subr.bf16.mxu0 0
        %1757 = vmatpush1.bf16.msra.mxu0 0
        %1758 = vmatprep.subr.bf16.mxu0 0
        %1759 = vmatpush1.bf16.msra.mxu0 0
        %1760 = vmatprep.subr.bf16.mxu0 0
        %1761 = vmatpush1.bf16.msra.mxu0 0
        %1762 = vmatprep.subr.bf16.mxu0 0
        %1763 = vmatpush1.bf16.msra.mxu0 0
        %1764 = vmatprep.subr.bf16.mxu0 0
        %1765 = vmatpush1.bf16.msra.mxu0 0
        %1766 = vmatprep.subr.bf16.mxu0 0
        %1767 = vmatpush1.bf16.msra.mxu0 0
        %1768 = vmatprep.subr.bf16.mxu0 0
        %1769 = vmatpush1.bf16.msra.mxu0 %v1752
        %1770 = vmatprep.subr.bf16.mxu0 0
        %1771 = vmatpush2.bf16.msra.mxu0 0
        %1772 = vmatprep.subr.bf16.mxu0 0
        %1773 = vmatpush2.bf16.msra.mxu0 0
        %1774 = vmatprep.subr.bf16.mxu0 0
        %1775 = vmatpush2.bf16.msra.mxu0 0
        %1776 = vmatprep.subr.bf16.mxu0 0
        %1777 = vmatpush2.bf16.msra.mxu0 0
        %1778 = vmatprep.subr.bf16.mxu0 0
        %1779 = vmatpush2.bf16.msra.mxu0 0
        %1780 = vmatprep.subr.bf16.mxu0 0
        %1781 = vmatpush2.bf16.msra.mxu0 0
        %1782 = vmatprep.subr.bf16.mxu0 0
        %1783 = vmatpush2.bf16.msra.mxu0 0
        %1784 = vmatprep.subr.bf16.mxu0 0
        %1785 = vmatpush2.bf16.msra.mxu0 0
        %1786 = vmatprep.mubr.bf16.mxu0 0
        %1787 = vmatmul.mubr.bf16.gmra.mxu0 %v1748
        %v1788 = vpop.f32.mrf.mxu0
        %v1789 = vadd.f32 0.0, %v1788
        %v1790 = vpop.f32.mrf.mxu0
        %v1791 = vpop.f32.mrf.mxu0
        %v1792 = vpop.f32.mrf.mxu0
        %1793 = vdwg.mxu0
        %1795 = vrot.lane.b32.xlu0 %v1508, 96
        %v1796 = vpop.permute.xlu0 %1795
        %v1798 = vsel %vm1695, %v1741, 0
        %v1801 = vsel %vm1750, %v1796, 0
        %1803 = vmatprep.subr.bf16.mxu0 0
        %1804 = vmatpush1.bf16.msra.mxu0 0
        %1805 = vmatprep.subr.bf16.mxu0 0
        %1806 = vmatpush1.bf16.msra.mxu0 0
        %1807 = vmatprep.subr.bf16.mxu0 0
        %1808 = vmatpush1.bf16.msra.mxu0 0
        %1809 = vmatprep.subr.bf16.mxu0 0
        %1810 = vmatpush1.bf16.msra.mxu0 0
        %1811 = vmatprep.subr.bf16.mxu0 0
        %1812 = vmatpush1.bf16.msra.mxu0 0
        %1813 = vmatprep.subr.bf16.mxu0 0
        %1814 = vmatpush1.bf16.msra.mxu0 0
        %1815 = vmatprep.subr.bf16.mxu0 0
        %1816 = vmatpush1.bf16.msra.mxu0 0
        %1817 = vmatprep.subr.bf16.mxu0 0
        %1818 = vmatpush1.bf16.msra.mxu0 %v1801
        %1819 = vmatprep.subr.bf16.mxu0 0
        %1820 = vmatpush2.bf16.msra.mxu0 0
        %1821 = vmatprep.subr.bf16.mxu0 0
        %1822 = vmatpush2.bf16.msra.mxu0 0
        %1823 = vmatprep.subr.bf16.mxu0 0
        %1824 = vmatpush2.bf16.msra.mxu0 0
        %1825 = vmatprep.subr.bf16.mxu0 0
        %1826 = vmatpush2.bf16.msra.mxu0 0
        %1827 = vmatprep.subr.bf16.mxu0 0
        %1828 = vmatpush2.bf16.msra.mxu0 0
        %1829 = vmatprep.subr.bf16.mxu0 0
        %1830 = vmatpush2.bf16.msra.mxu0 0
        %1831 = vmatprep.subr.bf16.mxu0 0
        %1832 = vmatpush2.bf16.msra.mxu0 0
        %1833 = vmatprep.subr.bf16.mxu0 0
        %1834 = vmatpush2.bf16.msra.mxu0 0
        %1835 = vmatprep.mubr.bf16.mxu0 0
        %1836 = vmatmul.mubr.bf16.gmra.mxu0 %v1798
        %v1837 = vpop.f32.mrf.mxu0
        %v1838 = vadd.f32 0.0, %v1837
        %v1839 = vpop.f32.mrf.mxu0
        %v1840 = vpop.f32.mrf.mxu0
        %v1841 = vpop.f32.mrf.mxu0
        %1842 = vdwg.mxu0
        %1844 = vrot.lane.b32.xlu0 %v1509, 96
        %v1845 = vpop.permute.xlu0 %1844
        %v1847 = vsel %vm1695, %v1742, 0
        %v1850 = vsel %vm1750, %v1845, 0
        %1852 = vmatprep.subr.bf16.mxu0 0
        %1853 = vmatpush1.bf16.msra.mxu0 0
        %1854 = vmatprep.subr.bf16.mxu0 0
        %1855 = vmatpush1.bf16.msra.mxu0 0
        %1856 = vmatprep.subr.bf16.mxu0 0
        %1857 = vmatpush1.bf16.msra.mxu0 0
        %1858 = vmatprep.subr.bf16.mxu0 0
        %1859 = vmatpush1.bf16.msra.mxu0 0
        %1860 = vmatprep.subr.bf16.mxu0 0
        %1861 = vmatpush1.bf16.msra.mxu0 0
        %1862 = vmatprep.subr.bf16.mxu0 0
        %1863 = vmatpush1.bf16.msra.mxu0 0
        %1864 = vmatprep.subr.bf16.mxu0 0
        %1865 = vmatpush1.bf16.msra.mxu0 0
        %1866 = vmatprep.subr.bf16.mxu0 0
        %1867 = vmatpush1.bf16.msra.mxu0 %v1850
        %1868 = vmatprep.subr.bf16.mxu0 0
        %1869 = vmatpush2.bf16.msra.mxu0 0
        %1870 = vmatprep.subr.bf16.mxu0 0
        %1871 = vmatpush2.bf16.msra.mxu0 0
        %1872 = vmatprep.subr.bf16.mxu0 0
        %1873 = vmatpush2.bf16.msra.mxu0 0
        %1874 = vmatprep.subr.bf16.mxu0 0
        %1875 = vmatpush2.bf16.msra.mxu0 0
        %1876 = vmatprep.subr.bf16.mxu0 0
        %1877 = vmatpush2.bf16.msra.mxu0 0
        %1878 = vmatprep.subr.bf16.mxu0 0
        %1879 = vmatpush2.bf16.msra.mxu0 0
        %1880 = vmatprep.subr.bf16.mxu0 0
        %1881 = vmatpush2.bf16.msra.mxu0 0
        %1882 = vmatprep.subr.bf16.mxu0 0
        %1883 = vmatpush2.bf16.msra.mxu0 0
        %1884 = vmatprep.mubr.bf16.mxu0 0
        %1885 = vmatmul.mubr.bf16.gmra.mxu0 %v1847
        %v1886 = vpop.f32.mrf.mxu0
        %v1887 = vadd.f32 0.0, %v1886
        %v1888 = vpop.f32.mrf.mxu0
        %v1889 = vpop.f32.mrf.mxu0
        %v1890 = vpop.f32.mrf.mxu0
        %1891 = vdwg.mxu0
        %1893 = vrot.lane.b32.xlu0 %v1510, 96
        %v1894 = vpop.permute.xlu0 %1893
        %v1896 = vsel %vm1695, %v1743, 0
        %v1899 = vsel %vm1750, %v1894, 0
        %1901 = vmatprep.subr.bf16.mxu0 0
        %1902 = vmatpush1.bf16.msra.mxu0 0
        %1903 = vmatprep.subr.bf16.mxu0 0
        %1904 = vmatpush1.bf16.msra.mxu0 0
        %1905 = vmatprep.subr.bf16.mxu0 0
        %1906 = vmatpush1.bf16.msra.mxu0 0
        %1907 = vmatprep.subr.bf16.mxu0 0
        %1908 = vmatpush1.bf16.msra.mxu0 0
        %1909 = vmatprep.subr.bf16.mxu0 0
        %1910 = vmatpush1.bf16.msra.mxu0 0
        %1911 = vmatprep.subr.bf16.mxu0 0
        %1912 = vmatpush1.bf16.msra.mxu0 0
        %1913 = vmatprep.subr.bf16.mxu0 0
        %1914 = vmatpush1.bf16.msra.mxu0 0
        %1915 = vmatprep.subr.bf16.mxu0 0
        %1916 = vmatpush1.bf16.msra.mxu0 %v1899
        %1917 = vmatprep.subr.bf16.mxu0 0
        %1918 = vmatpush2.bf16.msra.mxu0 0
        %1919 = vmatprep.subr.bf16.mxu0 0
        %1920 = vmatpush2.bf16.msra.mxu0 0
        %1921 = vmatprep.subr.bf16.mxu0 0
        %1922 = vmatpush2.bf16.msra.mxu0 0
        %1923 = vmatprep.subr.bf16.mxu0 0
        %1924 = vmatpush2.bf16.msra.mxu0 0
        %1925 = vmatprep.subr.bf16.mxu0 0
        %1926 = vmatpush2.bf16.msra.mxu0 0
        %1927 = vmatprep.subr.bf16.mxu0 0
        %1928 = vmatpush2.bf16.msra.mxu0 0
        %1929 = vmatprep.subr.bf16.mxu0 0
        %1930 = vmatpush2.bf16.msra.mxu0 0
        %1931 = vmatprep.subr.bf16.mxu0 0
        %1932 = vmatpush2.bf16.msra.mxu0 0
        %1933 = vmatprep.mubr.bf16.mxu0 0
        %1934 = vmatmul.mubr.bf16.gmra.mxu0 %v1896
        %v1935 = vpop.f32.mrf.mxu0
        %v1936 = vadd.f32 0.0, %v1935
        %v1937 = vpop.f32.mrf.mxu0
        %v1938 = vpop.f32.mrf.mxu0
        %v1939 = vpop.f32.mrf.mxu0
        %1940 = vdwg.mxu0
        %1942 = vrot.lane.b32.xlu0 %v1838, 8
        %v1943 = vpop.permute.xlu0 %1942
        %1946 = vrot.lane.b32.xlu0 %v1887, 16
        %v1947 = vpop.permute.xlu0 %1946
        %1950 = vrot.lane.b32.xlu0 %v1936, 24
        %v1951 = vpop.permute.xlu0 %1950
        %v1953 = vsel %vm785, %v1789, %v1943
        %v1954 = vsel %vm1233, %v1953, %v1947
        %v1955 = vsel %vm1235, %v1954, %v1951
        %v1956 = vpack.c.bf16 %v1955, %v1955
        %v1958 = vlaneseq
        %v1959 = vshrl.u32 %v1958, 7
        %v1960 = vsub.s32 0, %v1959
        %v1961 = vrot.slane %v1472, %v1960
        %v1967 = vunpack.c.l.b16 %v1468
        %v1968 = vunpack.c.l.b16 %v1469
        %v1969 = vunpack.c.l.b16 %v1470
        %v1970 = vunpack.c.l.b16 %v1471
        %v1971 = vpack.c.b16 %v1968, %v1967
        %v1972 = vpack.c.b16 %v1970, %v1969
        %v1976 = vsel %vm663, %v1956, 0
        %1978 = vmatprep.subr.bf16.mxu0 0
        %1979 = vmatpush1.bf16.msra.mxu0 0
        %1980 = vmatprep.subr.bf16.mxu0 0
        %1981 = vmatpush1.bf16.msra.mxu0 0
        %1982 = vmatprep.subr.bf16.mxu0 0
        %1983 = vmatpush1.bf16.msra.mxu0 0
        %1984 = vmatprep.subr.bf16.mxu0 0
        %1985 = vmatpush1.bf16.msra.mxu0 0
        %1986 = vmatprep.subr.bf16.mxu0 0
        %1987 = vmatpush1.bf16.msra.mxu0 0
        %1988 = vmatprep.subr.bf16.mxu0 0
        %1989 = vmatpush1.bf16.msra.mxu0 0
        %1990 = vmatprep.subr.bf16.mxu0 0
        %1991 = vmatpush1.bf16.msra.mxu0 %v1972
        %1992 = vmatprep.subr.bf16.mxu0 0
        %1993 = vmatpush1.bf16.msra.mxu0 %v1971
        %1994 = vmatprep.subr.bf16.mxu0 0
        %1995 = vmatpush2.bf16.msra.mxu0 0
        %1996 = vmatprep.subr.bf16.mxu0 0
        %1997 = vmatpush2.bf16.msra.mxu0 0
        %1998 = vmatprep.subr.bf16.mxu0 0
        %1999 = vmatpush2.bf16.msra.mxu0 0
        %2000 = vmatprep.subr.bf16.mxu0 0
        %2001 = vmatpush2.bf16.msra.mxu0 0
        %2002 = vmatprep.subr.bf16.mxu0 0
        %2003 = vmatpush2.bf16.msra.mxu0 0
        %2004 = vmatprep.subr.bf16.mxu0 0
        %2005 = vmatpush2.bf16.msra.mxu0 0
        %2006 = vmatprep.subr.bf16.mxu0 0
        %2007 = vmatpush2.bf16.msra.mxu0 0
        %2008 = vmatprep.subr.bf16.mxu0 0
        %2009 = vmatpush2.bf16.msra.mxu0 0
        %2010 = vmatprep.mubr.bf16.mxu0 0
        %2011 = vmatmul.mubr.bf16.gmra.mxu0 %v1976
        %v2012 = vpop.f32.mrf.mxu0
        %v2013 = vadd.f32 %v1961, %v2012
        %v2014 = vpop.f32.mrf.mxu0
        %v2015 = vpop.f32.mrf.mxu0
        %v2016 = vpop.f32.mrf.mxu0
        %2017 = vdwg.mxu0
        %v2018 = vadd.f32 %v1299, %v2013
        %v2019 = vld [vmem:[%s17 + $0x2] sm:$0x1]
        %v2020 = vld [vmem:[%s18 + $0x2] sm:$0x1]
        %v2021 = vsel %vm663, %v2018, 0.0
        %2022 = vadd.xlane.f32.xlu0 %v2021
        %v2023 = vpop.xlane.xlu0 %2022
        %v2024 = vmul.f32 %v2023, %v667
        %v2025 = vsub.f32 %v2018, %v2024
        %v2026 = vmul.f32 %v2025, %v2025
        %v2027 = vsel %vm663, %v2026, 0.0
        %2028 = vadd.xlane.f32.xlu0 %v2027
        %v2029 = vpop.xlane.xlu0 %2028
        %v2030 = vmul.f32 %v2029, 0.032258064
        %v2031 = vrsqrt.pop %v2030
        %v2032 = vmul.f32 %v2030, %v2031
        %vm2033 = vcmp.eq.f32.partialorder %v2030, inf
        %v2034 = vsel %vm2033, %v2030, %v2032
        %vm2035 = vcmp.eq.f32.partialorder %v2030, 0.0
        %v2036 = vand.u32 %v2030, 2147483648
        %v2037 = vsel %vm2035, %v2036, %v2034
        %v2038 = vadd.f32 %v2037, 1e-06
        %v2039 = vrcp.pop %v2038
        %v2040 = vmul.f32 1.0, %v2039
        %v2041 = vmul.f32 %v2025, %v2040
        %v2042 = vlaneseq
        %v2043 = vshrl.u32 %v2042, 7
        %v2044 = vsub.s32 0, %v2043
        %v2045 = vrot.slane %v2019, %v2044
        %v2046 = vmul.f32 %v2045, %v2041
        %v2047 = vlaneseq
        %v2048 = vshrl.u32 %v2047, 7
        %v2049 = vsub.s32 0, %v2048
        %v2050 = vrot.slane %v2020, %v2049
        %v2051 = vadd.f32 %v2046, %v2050
        %v2052 = vpack.c.bf16 %v2051, %v2051
        %v2053 = vld [vmem:[%s13] sm:$0xf]
        %v2054 = vld [vmem:[%s13 + $0x4] sm:$0xf]
        %v2055 = vld [vmem:[%s13 + $0x8] sm:$0xf]
        %v2056 = vld [vmem:[%s13 + $0xc] sm:$0xf]
        %v2057 = vld [vmem:[%s14] sm:$0x1]
        %v2059 = vlaneseq
        %v2060 = vshrl.u32 %v2059, 7
        %v2061 = vsub.s32 0, %v2060
        %v2062 = vrot.slane %v2057, %v2061
        %v2068 = vunpack.c.l.b16 %v2053
        %v2069 = vunpack.c.l.b16 %v2054
        %v2070 = vunpack.c.l.b16 %v2055
        %v2071 = vunpack.c.l.b16 %v2056
        %v2072 = vpack.c.b16 %v2069, %v2068
        %v2073 = vpack.c.b16 %v2071, %v2070
        %v2077 = vsel %vm663, %v2052, 0
        %2079 = vmatprep.subr.bf16.mxu0 0
        %2080 = vmatpush1.bf16.msra.mxu0 0
        %2081 = vmatprep.subr.bf16.mxu0 0
        %2082 = vmatpush1.bf16.msra.mxu0 0
        %2083 = vmatprep.subr.bf16.mxu0 0
        %2084 = vmatpush1.bf16.msra.mxu0 0
        %2085 = vmatprep.subr.bf16.mxu0 0
        %2086 = vmatpush1.bf16.msra.mxu0 0
        %2087 = vmatprep.subr.bf16.mxu0 0
        %2088 = vmatpush1.bf16.msra.mxu0 0
        %2089 = vmatprep.subr.bf16.mxu0 0
        %2090 = vmatpush1.bf16.msra.mxu0 0
        %2091 = vmatprep.subr.bf16.mxu0 0
        %2092 = vmatpush1.bf16.msra.mxu0 %v2073
        %2093 = vmatprep.subr.bf16.mxu0 0
        %2094 = vmatpush1.bf16.msra.mxu0 %v2072
        %2095 = vmatprep.subr.bf16.mxu0 0
        %2096 = vmatpush2.bf16.msra.mxu0 0
        %2097 = vmatprep.subr.bf16.mxu0 0
        %2098 = vmatpush2.bf16.msra.mxu0 0
        %2099 = vmatprep.subr.bf16.mxu0 0
        %2100 = vmatpush2.bf16.msra.mxu0 0
        %2101 = vmatprep.subr.bf16.mxu0 0
        %2102 = vmatpush2.bf16.msra.mxu0 0
        %2103 = vmatprep.subr.bf16.mxu0 0
        %2104 = vmatpush2.bf16.msra.mxu0 0
        %2105 = vmatprep.subr.bf16.mxu0 0
        %2106 = vmatpush2.bf16.msra.mxu0 0
        %2107 = vmatprep.subr.bf16.mxu0 0
        %2108 = vmatpush2.bf16.msra.mxu0 0
        %2109 = vmatprep.subr.bf16.mxu0 0
        %2110 = vmatpush2.bf16.msra.mxu0 0
        %2111 = vmatprep.mubr.bf16.mxu0 0
        %2112 = vmatmul.mubr.bf16.gmra.mxu0 %v2077
        %v2113 = vpop.f32.mrf.mxu0
        %v2114 = vadd.f32 %v2062, %v2113
        %v2115 = vpop.f32.mrf.mxu0
        %v2116 = vpop.f32.mrf.mxu0
        %v2117 = vpop.f32.mrf.mxu0
        %2118 = vdwg.mxu0
        %v2119 = vmax.f32 %v2114, 0.0
        %v2120 = vpack.c.bf16 %v2119, %v2119
        %v2121 = vld [vmem:[%s15] sm:$0xf]
        %v2122 = vld [vmem:[%s15 + $0x4] sm:$0xf]
        %v2123 = vld [vmem:[%s15 + $0x8] sm:$0xf]
        %v2124 = vld [vmem:[%s15 + $0xc] sm:$0xf]
        %v2125 = vld [vmem:[%s15 + $0x10] sm:$0xf]
        %v2126 = vld [vmem:[%s15 + $0x14] sm:$0xf]
        %v2127 = vld [vmem:[%s15 + $0x18] sm:$0xf]
        %v2128 = vld [vmem:[%s15 + $0x1c] sm:$0xf]
        %v2129 = vld [vmem:[%s16] sm:$0x1]
        %v2131 = vlaneseq
        %v2132 = vshrl.u32 %v2131, 7
        %v2133 = vsub.s32 0, %v2132
        %v2134 = vrot.slane %v2129, %v2133
        %v2144 = vunpack.c.l.b16 %v2121
        %v2145 = vunpack.c.l.b16 %v2122
        %v2146 = vunpack.c.l.b16 %v2123
        %v2147 = vunpack.c.l.b16 %v2124
        %v2148 = vunpack.c.l.b16 %v2125
        %v2149 = vunpack.c.l.b16 %v2126
        %v2150 = vunpack.c.l.b16 %v2127
        %v2151 = vunpack.c.l.b16 %v2128
        %v2152 = vpack.c.b16 %v2145, %v2144
        %v2153 = vpack.c.b16 %v2147, %v2146
        %v2154 = vpack.c.b16 %v2149, %v2148
        %v2155 = vpack.c.b16 %v2151, %v2150
        %vm2160 = vcmask 523264
        %v2162 = vsel %vm2160, %v2120, 0
        %2164 = vmatprep.subr.bf16.mxu0 0
        %2165 = vmatpush1.bf16.msra.mxu0 0
        %2166 = vmatprep.subr.bf16.mxu0 0
        %2167 = vmatpush1.bf16.msra.mxu0 0
        %2168 = vmatprep.subr.bf16.mxu0 0
        %2169 = vmatpush1.bf16.msra.mxu0 0
        %2170 = vmatprep.subr.bf16.mxu0 0
        %2171 = vmatpush1.bf16.msra.mxu0 0
        %2172 = vmatprep.subr.bf16.mxu0 0
        %2173 = vmatpush1.bf16.msra.mxu0 %v2155
        %2174 = vmatprep.subr.bf16.mxu0 0
        %2175 = vmatpush1.bf16.msra.mxu0 %v2154
        %2176 = vmatprep.subr.bf16.mxu0 0
        %2177 = vmatpush1.bf16.msra.mxu0 %v2153
        %2178 = vmatprep.subr.bf16.mxu0 0
        %2179 = vmatpush1.bf16.msra.mxu0 %v2152
        %2180 = vmatprep.subr.bf16.mxu0 0
        %2181 = vmatpush2.bf16.msra.mxu0 0
        %2182 = vmatprep.subr.bf16.mxu0 0
        %2183 = vmatpush2.bf16.msra.mxu0 0
        %2184 = vmatprep.subr.bf16.mxu0 0
        %2185 = vmatpush2.bf16.msra.mxu0 0
        %2186 = vmatprep.subr.bf16.mxu0 0
        %2187 = vmatpush2.bf16.msra.mxu0 0
        %2188 = vmatprep.subr.bf16.mxu0 0
        %2189 = vmatpush2.bf16.msra.mxu0 0
        %2190 = vmatprep.subr.bf16.mxu0 0
        %2191 = vmatpush2.bf16.msra.mxu0 0
        %2192 = vmatprep.subr.bf16.mxu0 0
        %2193 = vmatpush2.bf16.msra.mxu0 0
        %2194 = vmatprep.subr.bf16.mxu0 0
        %2195 = vmatpush2.bf16.msra.mxu0 0
        %2196 = vmatprep.mubr.bf16.mxu0 0
        %2197 = vmatmul.mubr.bf16.gmra.mxu0 %v2162
        %v2198 = vpop.f32.mrf.mxu0
        %v2199 = vadd.f32 %v2134, %v2198
        %v2200 = vpop.f32.mrf.mxu0
        %v2201 = vpop.f32.mrf.mxu0
        %v2202 = vpop.f32.mrf.mxu0
        %2203 = vdwg.mxu0
        %v2204 = vadd.f32 %v2018, %v2199
        %2205 = vst.msk [vmem:[%s637] sm:$0xff] %vm663, %v2204
        %s2206 = sand.u32 %s436, 1
        %s2207 = scalar_lea.sflag [#allocation6], %s2206
        %s2208 = sand.u32 %s436, 1
        %s2209 = smul.addr %s2208, 8
        %s2210 = scalar_lea.vmem [#allocation12], %s2209
        // Predicated region
        $region109: #{tpu_custom_call.1} parent=91 // pred_check
          %p2211 = pneg %p446
        $region110: #{tpu_custom_call.1} parent=91 // pred_check_branch
          %2213 = sbr.rel (%p2211) target = $region112
        $region111: #{tpu_custom_call.1} parent=91 // pred_region
          %s2215 = ssub.s32 128, 128
          %2216 = vsyncadd %s2207, %s2215
          %s2217 = smul.addr %s40, 128
          %s2218 = scalar_lea.hbm %s19, %s2217
          %s2220 = sshll.u32 %s2210, 4
          %s2221 = int_to_ptr.vmem [resolvable:$true] %s2220
          %2223 = dma.vmem_to_hbm [thread:$0]  %s2221, 128, %s2218, %s2207
        $region112: #{tpu_custom_call.1} parent=91 // pred_fallthru
          _
      $region92: #{tpu_custom_call.1} parent=5 // pred_fallthru
        _
      %p2224 = scmp.le.s32.totalorder 2, %s35
      // Predicated region
      $region113: #{tpu_custom_call.1} parent=5 // pred_check
        %p2225 = pneg %p2224
      $region114: #{tpu_custom_call.1} parent=5 // pred_check_branch
        %2227 = sbr.rel (%p2225) target = $region116
      $region115: #{tpu_custom_call.1} parent=5 // pred_region
        %s2228 = ssub.s32 %s35, 2
        // Predicated region
        $region117: #{tpu_custom_call.1} parent=115 // pred_check
          %p2229 = pneg %p452
        $region118: #{tpu_custom_call.1} parent=115 // pred_check_branch
          %2231 = sbr.rel (%p2229) target = $region120
        $region119: #{tpu_custom_call.1} parent=115 // pred_region
          %s2232 = sand.u32 %s437, 1
          %s2233 = scalar_lea.sflag [#allocation6], %s2232
          %s2234 = sand.u32 %s437, 1
          %s2235 = smul.addr %s2234, 8
          %s2236 = scalar_lea.vmem [#allocation12], %s2235
          %2237 = dma.done %s2233, 128
        $region120: #{tpu_custom_call.1} parent=115 // pred_fallthru
          _
      $region116: #{tpu_custom_call.1} parent=5 // pred_fallthru
        _
    $region6: #{tpu_custom_call.1} parent=1 // loop_footer
      %s39 = sadd.s32 1, %s35
    $region7: #{tpu_custom_call.1} parent=1 // loop_footer_branch
      %34 = sbr.rel target = $region3
    $region8: #{tpu_custom_call.1} parent=1 // loop_exit
      _
    %2238 = vsyncpa [#allocation5], 1
    %s2239 = scalar_lea.sflag [#allocation5], 1
    %2240 = vsyncpa %s2239, 1
    %2241 = vsyncpa [#allocation8], 1
    %2242 = vsyncpa [#allocation11], 1
    %2243 = vsyncpa [#allocation6], 1
    %s2244 = scalar_lea.sflag [#allocation6], 1
    %2245 = vsyncpa %s2244, 1

</llo_original>
